<compile_context>
chip_gen: v7x
topology: tpu7x:2x2x1
jax: 0.10.0
libtpu: 0.0.40
codegen_flags: <defaults>
</compile_context>

<pallas_src>
import functools

import jax
import jax.numpy as jnp
from jax.experimental import pallas as pl
from jax.experimental.pallas import tpu as pltpu

_LANE = 128
_ONEHOT_MAX_NODES = 256          # one-hot gather-matmul pays off only for small N
_VMEM_LIMIT = 64 * 1024 * 1024   # explicit scoped-VMEM limit (v5e default is 16 MiB)


def _round_up(x, m):
    return (x + m - 1) // m * m


def _pad2(a, rows, cols):
    return jnp.pad(a, ((0, rows - a.shape[0]), (0, cols - a.shape[1])))


def _edge_tiling(e, tile_e):
    # Clamp so tiny edge lists don't compute mostly padding; default target
    # 4096 amortizes the ~0.35us per-grid-step overhead (sweep 2048-8192).
    tile_e = min(tile_e, _round_up(max(e, 1), 512))
    e_pad = _round_up(max(e, 1), tile_e)
    return tile_e, e_pad, e_pad // tile_e


# ----------------------------------------------------------------------------
# Shared tail: bias/ReLU, layer 2, layer 3, sigmoid.  Feature-major, so every
# intermediate is [D, TILE_E] with edges on the 128-lane axis and the final
# score row is a lane-dense [1, TILE_E] store.
# ----------------------------------------------------------------------------
def _mlp_tail(u, b1, w2_ref, b2_ref, w3_ref, b3, apply_sigmoid, out_dtype):
    cdt = w2_ref.dtype
    h = jnp.maximum(u + b1, 0.0)                                   # f32 epilogue
    h = jnp.dot(w2_ref[...], h.astype(cdt), preferred_element_type=jnp.float32)
    h = jnp.maximum(h + b2_ref[...], 0.0)
    s = jnp.dot(w3_ref[...], h.astype(cdt), preferred_element_type=jnp.float32)
    s = s + b3
    if apply_sigmoid:
        s = 1.0 / (1.0 + jnp.exp(-s))                              # EUP exp
    return s.astype(out_dtype)


# ----------------------------------------------------------------------------
# Kernel A ("gather" path, small N): layer 1 is folded into per-node tables
# P^T/Q^T; the per-edge gather is a one-hot matmul on the MXU, so the only
# streamed inputs are two int32 id rows per tile.
# ----------------------------------------------------------------------------
def _decoder_gather_kernel(src_ref, dst_ref, pT_ref, qT_ref, b1_ref,
                           w2_ref, b2_ref, w3_ref, b3_ref, o_ref,
                           *, apply_sigmoid):
    n_pad = pT_ref.shape[1]
    t = src_ref.shape[1]
    cdt = pT_ref.dtype
    node_ids = jax.lax.broadcasted_iota(jnp.int32, (n_pad, t), 0)
    oh_src = jnp.where(node_ids == src_ref[...], 1.0, 0.0).astype(cdt)
    oh_dst = jnp.where(node_ids == dst_ref[...], 1.0, 0.0).astype(cdt)
    # u[:, e] = P^T[:, src[e]] + Q^T[:, dst[e]]   (exact selection via one-hot)
    u = (jnp.dot(pT_ref[...], oh_src, preferred_element_type=jnp.float32)
         + jnp.dot(qT_ref[...], oh_dst, preferred_element_type=jnp.float32))
    o_ref[...] = _mlp_tail(u, b1_ref[...], w2_ref, b2_ref, w3_ref,
                           b3_ref[0, 0], apply_sigmoid, o_ref.dtype)


# ----------------------------------------------------------------------------
# Kernel B ("dense" fallback, large N): streamed feature-major X^T tiles.
# ----------------------------------------------------------------------------
def _decoder_dense_kernel(xT_ref, w1_ref, b1_ref, w2_ref, b2_ref, w3_ref,
                          b3_ref, o_ref, *, apply_sigmoid):
    u = jnp.dot(w1_ref[...], xT_ref[...], preferred_element_type=jnp.float32)
    o_ref[...] = _mlp_tail(u, b1_ref[...], w2_ref, b2_ref, w3_ref,
                           b3_ref[0, 0], apply_sigmoid, o_ref.dtype)


# ----------------------------------------------------------------------------
# Wrappers
# ----------------------------------------------------------------------------
def _apply_gather(params, z, src, dst, *, sigmoid, tile_e, compute_dtype):
    w1, b1, w2, b2, w3, b3 = params
    n, hdim = z.shape
    d_in = 2 * hdim
    d = _round_up(d_in, _LANE)
    n_pad = _round_up(n, _LANE)
    e = src.shape[0]
    tile_e, e_pad, n_tiles = _edge_tiling(e, tile_e)

    # Fold layer 1 into per-node tables (tiny [2H, N] matmuls, exact f32).
    hp = jax.lax.Precision.HIGHEST
    pT = jnp.dot(w1[:, :hdim], z.T, precision=hp)
    qT = jnp.dot(w1[:, hdim:], z.T, precision=hp)
    pTp = _pad2(pT, d, n_pad).astype(compute_dtype)
    qTp = _pad2(qT, d, n_pad).astype(compute_dtype)
    w2p = _pad2(w2, d, d).astype(compute_dtype)
    w3p = _pad2(w3, 1, d).astype(compute_dtype)
    b1p = jnp.pad(b1, (0, d - d_in)).reshape(d, 1).astype(jnp.float32)
    b2p = jnp.pad(b2, (0, d - d_in)).reshape(d, 1).astype(jnp.float32)
    b3p = b3.reshape(1, 1).astype(jnp.float32)
    src_p = jnp.pad(src, (0, e_pad - e)).reshape(1, e_pad)
    dst_p = jnp.pad(dst, (0, e_pad - e)).reshape(1, e_pad)

    itm = jnp.dtype(compute_dtype).itemsize
    flops = 2 * e_pad * (2 * d * n_pad + d * d + d)
    bytes_accessed = (2 * e_pad * 4 + 2 * d * n_pad * itm
                      + (d * d + d) * itm + (2 * d + 1) * 4 + e_pad * 4)

    const = lambda i: (0, 0)
    out = pl.pallas_call(
        functools.partial(_decoder_gather_kernel, apply_sigmoid=sigmoid),
        out_shape=jax.ShapeDtypeStruct((1, e_pad), jnp.float32),
        grid=(n_tiles,),
        in_specs=[
            pl.BlockSpec((1, tile_e), lambda i: (0, i)),   # src ids (streamed)
            pl.BlockSpec((1, tile_e), lambda i: (0, i)),   # dst ids (streamed)
            pl.BlockSpec((d, n_pad), const),               # P^T (VMEM-resident)
            pl.BlockSpec((d, n_pad), const),               # Q^T
            pl.BlockSpec((d, 1), const),                   # b1
            pl.BlockSpec((d, d), const),                   # W2
            pl.BlockSpec((d, 1), const),                   # b2
            pl.BlockSpec((1, d), const),                   # W3
            pl.BlockSpec(memory_space=pltpu.MemorySpace.SMEM),   # b3 scalar
        ],
        out_specs=pl.BlockSpec((1, tile_e), lambda i: (0, i)),
        compiler_params=pltpu.CompilerParams(
            dimension_semantics=("parallel",),
            vmem_limit_bytes=_VMEM_LIMIT),
        cost_estimate=pl.CostEstimate(
            flops=flops,
            transcendentals=e_pad if sigmoid else 0,
            bytes_accessed=bytes_accessed),
    )(src_p, dst_p, pTp, qTp, b1p, w2p, b2p, w3p, b3p)
    return out[0, :e]


def _apply_dense(params, z, src, dst, *, sigmoid, tile_e, compute_dtype):
    w1, b1, w2, b2, w3, b3 = params
    n, hdim = z.shape
    d_in = 2 * hdim
    d = _round_up(d_in, _LANE)
    e = src.shape[0]
    tile_e, e_pad, n_tiles = _edge_tiling(e, tile_e)

    # TODO(synk): the gather + minor-dim transpose here is still XLA-side glue
    # (one bf16 HBM pass each); an in-kernel DMA row-gather would remove it for
    # graphs too large for the one-hot path.
    z_b = z.astype(compute_dtype)
    xT = jnp.concatenate([z_b[src], z_b[dst]], axis=1).T           # [2H, E] bf16
    xT = _pad2(xT, d, e_pad)

    w1p = _pad2(w1, d, d).astype(compute_dtype)
    w2p = _pad2(w2, d, d).astype(compute_dtype)
    w3p = _pad2(w3, 1, d).astype(compute_dtype)
    b1p = jnp.pad(b1, (0, d - d_in)).reshape(d, 1).astype(jnp.float32)
    b2p = jnp.pad(b2, (0, d - d_in)).reshape(d, 1).astype(jnp.float32)
    b3p = b3.reshape(1, 1).astype(jnp.float32)

    itm = jnp.dtype(compute_dtype).itemsize
    flops = 2 * e_pad * d * (2 * d + 1)
    bytes_accessed = (d * e_pad * itm + (2 * d * d + d) * itm
                      + (2 * d + 1) * 4 + e_pad * 4)

    const = lambda i: (0, 0)
    out = pl.pallas_call(
        functools.partial(_decoder_dense_kernel, apply_sigmoid=sigmoid),
        out_shape=jax.ShapeDtypeStruct((1, e_pad), jnp.float32),
        grid=(n_tiles,),
        in_specs=[
            pl.BlockSpec((d, tile_e), lambda i: (0, i)),   # X^T (streamed)
            pl.BlockSpec((d, d), const),                   # W1 (VMEM-resident)
            pl.BlockSpec((d, 1), const),                   # b1
            pl.BlockSpec((d, d), const),                   # W2
            pl.BlockSpec((d, 1), const),                   # b2
            pl.BlockSpec((1, d), const),                   # W3
            pl.BlockSpec(memory_space=pltpu.MemorySpace.SMEM),   # b3 scalar
        ],
        out_specs=pl.BlockSpec((1, tile_e), lambda i: (0, i)),
        compiler_params=pltpu.CompilerParams(
            dimension_semantics=("parallel",),
            vmem_limit_bytes=_VMEM_LIMIT),
        cost_estimate=pl.CostEstimate(
            flops=flops,
            transcendentals=e_pad if sigmoid else 0,
            bytes_accessed=bytes_accessed),
    )(xT, w1p, b1p, w2p, b2p, w3p, b3p)
    return out[0, :e]


# ----------------------------------------------------------------------------
# Module-level API mirroring MLPDecoder.forward / forward_all
# ----------------------------------------------------------------------------
def mlp_decoder_forward(params, z, edge_index, sigmoid=True, *, tile_e=4096,
                        compute_dtype=jnp.bfloat16, node_gather=None):
    src = jnp.asarray(edge_index[0], jnp.int32)
    dst = jnp.asarray(edge_index[1], jnp.int32)
    if node_gather is None:
        node_gather = z.shape[0] <= _ONEHOT_MAX_NODES
    fn = _apply_gather if node_gather else _apply_dense
    return fn(params, z, src, dst, sigmoid=sigmoid, tile_e=tile_e,
              compute_dtype=compute_dtype)


def mlp_decoder_forward_all(params, z, sigmoid=True, **kwargs):
    # TODO(synk): for very large graphs a dedicated 2-D (src_tile, dst_tile)
    # grid kernel would also avoid materializing the N^2 int32 index vectors.
    n = z.shape[0]
    ar = jnp.arange(n, dtype=jnp.int32)
    gx, gy = jnp.meshgrid(ar, ar, indexing="ij")
    edge_index = jnp.stack([gx.ravel(), gy.ravel()])
    return mlp_decoder_forward(params, z, edge_index, sigmoid=sigmoid,
                               **kwargs).reshape(n, n)


# ----------------------------------------------------------------------------
# Parameter init (torch.nn.Linear-style, weights in [out, in] layout)
# ----------------------------------------------------------------------------
def init_mlp_decoder_params(key, hidden_channels, dtype=jnp.float32):
    d = 2 * hidden_channels
    ks = jax.random.split(key, 6)

    def lin(kw, kb, fan_out, fan_in):
        lim = 1.0 / (fan_in ** 0.5)
        w = jax.random.uniform(kw, (fan_out, fan_in), dtype, -lim, lim)
        b = jax.random.uniform(kb, (fan_out,), dtype, -lim, lim)
        return w, b

    w1, b1 = lin(ks[0], ks[1], d, d)
    w2, b2 = lin(ks[2], ks[3], d, d)
    w3, b3 = lin(ks[4], ks[5], 1, d)
    return (w1, b1, w2, b2, w3, b3)


# ----------------------------------------------------------------------------
# References
# ----------------------------------------------------------------------------
def mlp_decoder_ref_f32(params, z, src, dst, sigmoid=True):
    """Exact float32 PyTorch-semantics reference."""
    w1, b1, w2, b2, w3, b3 = params
    hp = jax.lax.Precision.HIGHEST
    x = jnp.concatenate([z[src], z[dst]], axis=1)
    h = jnp.maximum(jnp.dot(x, w1.T, precision=hp) + b1, 0.0)
    h = jnp.maximum(jnp.dot(h, w2.T, precision=hp) + b2, 0.0)
    s = (jnp.dot(h, w3.T, precision=hp) + b3).ravel()
    return 1.0 / (1.0 + jnp.exp(-s)) if sigmoid else s


def _ref_gather_path(params, z, src, dst, sigmoid=True,
                     compute_dtype=jnp.bfloat16):
    """Mirrors the one-hot kernel's mixed precision (bf16 operands, f32 acc)."""
    w1, b1, w2, b2, w3, b3 = params
    hdim = z.shape[1]
    hp = jax.lax.Precision.HIGHEST
    c = lambda a: a.astype(compute_dtype).astype(jnp.float32)
    pT = c(jnp.dot(w1[:, :hdim], z.T, precision=hp))
    qT = c(jnp.dot(w1[:, hdim:], z.T, precision=hp))
    u = pT[:, src] + qT[:, dst] + b1[:, None]
    h = jnp.maximum(u, 0.0)
    h = jnp.maximum(jnp.dot(c(w2), c(h), precision=hp) + b2[:, None], 0.0)
    s = (jnp.dot(c(w3), c(h), precision=hp) + b3[:, None])[0]
    return 1.0 / (1.0 + jnp.exp(-s)) if sigmoid else s


def _ref_dense_path(params, z, src, dst, sigmoid=True,
                    compute_dtype=jnp.bfloat16):
    """Mirrors the materialized-X^T kernel's mixed precision."""
    w1, b1, w2, b2, w3, b3 = params
    hp = jax.lax.Precision.HIGHEST
    c = lambda a: a.astype(compute_dtype).astype(jnp.float32)
    zc = c(z)
    x = jnp.concatenate([zc[src], zc[dst]], axis=1)
    h = jnp.maximum(jnp.dot(x, c(w1).T, precision=hp) + b1, 0.0)
    h = jnp.maximum(jnp.dot(c(h), c(w2).T, precision=hp) + b2, 0.0)
    s = (jnp.dot(c(h), c(w3).T, precision=hp) + b3).ravel()
    return 1.0 / (1.0 + jnp.exp(-s)) if sigmoid else s


if __name__ == "__main__":
    hidden_channels = 64          # 2*H = 128 -> lane/MXU aligned, still small
    num_nodes = 32
    num_edges = 300

    key = jax.random.PRNGKey(0)
    k_z, k_p = jax.random.split(key)
    z = jax.random.normal(k_z, (num_nodes, hidden_channels), jnp.float32)

    # deterministic edge list [2, E]
    e_ar = jnp.arange(num_edges, dtype=jnp.int32)
    edge_index = jnp.stack([e_ar % num_nodes, (3 * e_ar + 5) % num_nodes])

    params = init_mlp_decoder_params(k_p, hidden_channels)

    # Path A: fused in-kernel one-hot gather (auto-selected, N <= 256).
    scores = mlp_decoder_forward(params, z, edge_index, sigmoid=True)
    # Path B: materialized feature-major fallback (forced, exercises kernel B).
    scores_dense = mlp_decoder_forward(params, z, edge_index, sigmoid=True,
                                       node_gather=False)
    # Dense adjacency path (uses path A, never materializes N^2 x 2H feats).
    adj = mlp_decoder_forward_all(params, z, sigmoid=True)
    jax.block_until_ready((scores, scores_dense, adj))

    src, dst = edge_index[0], edge_index[1]
    ref_gather = _ref_gather_path(params, z, src, dst, True)
    ref_dense = _ref_dense_path(params, z, src, dst, True)
    ref_f32 = mlp_decoder_ref_f32(params, z, src, dst, True)
    ar = jnp.arange(num_nodes, dtype=jnp.int32)
    gx, gy = jnp.meshgrid(ar, ar, indexing="ij")
    ref_all = _ref_gather_path(params, z, gx.ravel(), gy.ravel(),
                               True).reshape(num_nodes, num_nodes)

    assert scores.shape == (num_edges,)
    assert scores_dense.shape == (num_edges,)
    assert adj.shape == (num_nodes, num_nodes)
    # Tight checks against precision-mirroring references.
    assert jnp.allclose(scores, ref_gather, atol=2e-3, rtol=2e-3)
    assert jnp.allclose(scores_dense, ref_dense, atol=2e-3, rtol=2e-3)
    assert jnp.allclose(adj, ref_all, atol=2e-3, rtol=2e-3)
    # Looser check against the exact f32 PyTorch-semantics reference
    # (difference is purely bf16 mixed precision).
    assert jnp.allclose(scores, ref_f32, atol=2e-2, rtol=2e-2)
    assert jnp.allclose(scores_dense, ref_f32, atol=2e-2, rtol=2e-2)

    print("KERNEL_OK")
</pallas_src>

<mosaic_0001>
module attributes {stable_mosaic.version = 11 : i64} {
  func.func @_decoder_gather_kernel(%arg0: i32, %arg1: memref<1x512xi32, #tpu.memory_space<vmem>>, %arg2: memref<1x512xi32, #tpu.memory_space<vmem>>, %arg3: memref<128x128xbf16, #tpu.memory_space<vmem>>, %arg4: memref<128x128xbf16, #tpu.memory_space<vmem>>, %arg5: memref<128x1xf32, #tpu.memory_space<vmem>>, %arg6: memref<128x128xbf16, #tpu.memory_space<vmem>>, %arg7: memref<128x1xf32, #tpu.memory_space<vmem>>, %arg8: memref<1x128xbf16, #tpu.memory_space<vmem>>, %arg9: memref<1x1xf32, #tpu.memory_space<smem>>, %arg10: memref<1x512xf32, #tpu.memory_space<vmem>>) attributes {dimension_semantics = [#tpu.dimension_semantics<parallel>], iteration_bounds = array<i64: 1>, scalar_prefetch = 0 : i64, scratch_operands = 0 : i64, tpu.core_type = #tpu.core_type<tc>, window_params = [{transform_indices = @transform_0, window_bounds = array<i64: 1, 512>}, {transform_indices = @transform_1, window_bounds = array<i64: 1, 512>}, {pipeline_mode = #tpu.pipeline_mode<synchronous>, transform_indices = @transform_2, window_bounds = array<i64: 128, 128>}, {pipeline_mode = #tpu.pipeline_mode<synchronous>, transform_indices = @transform_3, window_bounds = array<i64: 128, 128>}, {pipeline_mode = #tpu.pipeline_mode<synchronous>, transform_indices = @transform_4, window_bounds = array<i64: 128, 1>}, {pipeline_mode = #tpu.pipeline_mode<synchronous>, transform_indices = @transform_5, window_bounds = array<i64: 128, 128>}, {pipeline_mode = #tpu.pipeline_mode<synchronous>, transform_indices = @transform_6, window_bounds = array<i64: 128, 1>}, {pipeline_mode = #tpu.pipeline_mode<synchronous>, transform_indices = @transform_7, window_bounds = array<i64: 1, 128>}, {transform_indices = @transform_8, window_bounds = array<i64: 1, 1>}, {transform_indices = @transform_9, window_bounds = array<i64: 1, 512>}]} {
    %0 = tpu.iota {dimensions = array<i32: 0>} : vector<128x512xi32>
    %c0 = arith.constant 0 : index
    %c0_0 = arith.constant 0 : index
    %1 = vector.load %arg1[%c0, %c0_0] : memref<1x512xi32, #tpu.memory_space<vmem>>, vector<1x512xi32>
    %2 = vector.broadcast %1 : vector<1x512xi32> to vector<128x512xi32>
    %3 = arith.cmpi eq, %0, %2 : vector<128x512xi32>
    %cst = arith.constant 1.000000e+00 : f32
    %cst_1 = arith.constant 0.000000e+00 : f32
    %4 = vector.broadcast %cst : f32 to vector<128x512xf32>
    %5 = vector.broadcast %cst_1 : f32 to vector<128x512xf32>
    %6 = arith.select %3, %4, %5 : vector<128x512xi1>, vector<128x512xf32>
    %7 = arith.truncf %6 : vector<128x512xf32> to vector<128x512xbf16>
    %c0_2 = arith.constant 0 : index
    %c0_3 = arith.constant 0 : index
    %8 = vector.load %arg2[%c0_2, %c0_3] : memref<1x512xi32, #tpu.memory_space<vmem>>, vector<1x512xi32>
    %9 = vector.broadcast %8 : vector<1x512xi32> to vector<128x512xi32>
    %10 = arith.cmpi eq, %0, %9 : vector<128x512xi32>
    %cst_4 = arith.constant 1.000000e+00 : f32
    %cst_5 = arith.constant 0.000000e+00 : f32
    %11 = vector.broadcast %cst_4 : f32 to vector<128x512xf32>
    %12 = vector.broadcast %cst_5 : f32 to vector<128x512xf32>
    %13 = arith.select %10, %11, %12 : vector<128x512xi1>, vector<128x512xf32>
    %14 = arith.truncf %13 : vector<128x512xf32> to vector<128x512xbf16>
    %c0_6 = arith.constant 0 : index
    %c0_7 = arith.constant 0 : index
    %15 = vector.load %arg3[%c0_6, %c0_7] : memref<128x128xbf16, #tpu.memory_space<vmem>>, vector<128x128xbf16>
    %cst_8 = arith.constant dense<0.000000e+00> : vector<128x512xf32>
    %16 = tpu.matmul %15, %7, %cst_8 {dimension_numbers = #tpu.dot_dimension_numbers<[1], [0], [0], [1], [0, 0, 1, 1], [], []>} : vector<128x128xbf16>, vector<128x512xbf16>, vector<128x512xf32> -> vector<128x512xf32>
    %c0_9 = arith.constant 0 : index
    %c0_10 = arith.constant 0 : index
    %17 = vector.load %arg4[%c0_9, %c0_10] : memref<128x128xbf16, #tpu.memory_space<vmem>>, vector<128x128xbf16>
    %cst_11 = arith.constant dense<0.000000e+00> : vector<128x512xf32>
    %18 = tpu.matmul %17, %14, %cst_11 {dimension_numbers = #tpu.dot_dimension_numbers<[1], [0], [0], [1], [0, 0, 1, 1], [], []>} : vector<128x128xbf16>, vector<128x512xbf16>, vector<128x512xf32> -> vector<128x512xf32>
    %19 = arith.addf %16, %18 : vector<128x512xf32>
    %c0_12 = arith.constant 0 : index
    %c0_13 = arith.constant 0 : index
    %20 = vector.load %arg5[%c0_12, %c0_13] : memref<128x1xf32, #tpu.memory_space<vmem>>, vector<128x1xf32>
    %c0_14 = arith.constant 0 : index
    %c0_15 = arith.constant 0 : index
    %21 = memref.load %arg9[%c0_14, %c0_15] : memref<1x1xf32, #tpu.memory_space<smem>>
    %22 = vector.broadcast %20 : vector<128x1xf32> to vector<128x512xf32>
    %23 = arith.addf %19, %22 : vector<128x512xf32>
    %cst_16 = arith.constant 0.000000e+00 : f32
    %24 = vector.broadcast %cst_16 : f32 to vector<128x512xf32>
    %25 = arith.maximumf %23, %24 : vector<128x512xf32>
    %c0_17 = arith.constant 0 : index
    %c0_18 = arith.constant 0 : index
    %26 = vector.load %arg6[%c0_17, %c0_18] : memref<128x128xbf16, #tpu.memory_space<vmem>>, vector<128x128xbf16>
    %27 = arith.truncf %25 : vector<128x512xf32> to vector<128x512xbf16>
    %cst_19 = arith.constant dense<0.000000e+00> : vector<128x512xf32>
    %28 = tpu.matmul %26, %27, %cst_19 {dimension_numbers = #tpu.dot_dimension_numbers<[1], [0], [0], [1], [0, 0, 1, 1], [], []>} : vector<128x128xbf16>, vector<128x512xbf16>, vector<128x512xf32> -> vector<128x512xf32>
    %c0_20 = arith.constant 0 : index
    %c0_21 = arith.constant 0 : index
    %29 = vector.load %arg7[%c0_20, %c0_21] : memref<128x1xf32, #tpu.memory_space<vmem>>, vector<128x1xf32>
    %30 = vector.broadcast %29 : vector<128x1xf32> to vector<128x512xf32>
    %31 = arith.addf %28, %30 : vector<128x512xf32>
    %cst_22 = arith.constant 0.000000e+00 : f32
    %32 = vector.broadcast %cst_22 : f32 to vector<128x512xf32>
    %33 = arith.maximumf %31, %32 : vector<128x512xf32>
    %c0_23 = arith.constant 0 : index
    %c0_24 = arith.constant 0 : index
    %34 = vector.load %arg8[%c0_23, %c0_24] : memref<1x128xbf16, #tpu.memory_space<vmem>>, vector<1x128xbf16>
    %35 = arith.truncf %33 : vector<128x512xf32> to vector<128x512xbf16>
    %cst_25 = arith.constant dense<0.000000e+00> : vector<1x512xf32>
    %36 = tpu.matmul %34, %35, %cst_25 {dimension_numbers = #tpu.dot_dimension_numbers<[1], [0], [0], [1], [0, 0, 1, 1], [], []>} : vector<1x128xbf16>, vector<128x512xbf16>, vector<1x512xf32> -> vector<1x512xf32>
    %37 = vector.broadcast %21 : f32 to vector<1x512xf32>
    %38 = arith.addf %36, %37 : vector<1x512xf32>
    %cst_26 = arith.constant 0.000000e+00 : f32
    %39 = vector.broadcast %cst_26 : f32 to vector<1x512xf32>
    %40 = arith.subf %39, %38 : vector<1x512xf32>
    %41 = math.exp %40 : vector<1x512xf32>
    %cst_27 = arith.constant 1.000000e+00 : f32
    %42 = vector.broadcast %cst_27 : f32 to vector<1x512xf32>
    %43 = arith.addf %42, %41 : vector<1x512xf32>
    %cst_28 = arith.constant 1.000000e+00 : f32
    %44 = vector.broadcast %cst_28 : f32 to vector<1x512xf32>
    %45 = arith.divf %44, %43 : vector<1x512xf32>
    %c0_29 = arith.constant 0 : index
    %c0_30 = arith.constant 0 : index
    %46 = vector.load %arg10[%c0_29, %c0_30] : memref<1x512xf32, #tpu.memory_space<vmem>>, vector<1x512xf32>
    tpu.vector_store %arg10[%c0_29, %c0_30], %45 {strides = array<i32>} : memref<1x512xf32, #tpu.memory_space<vmem>>, vector<1x512xf32>,
    return
  }
  func.func @transform_0(%arg0: i32) -> (i32, i32) {
    %c0_i32 = arith.constant 0 : i32
    %c0_i32_0 = arith.constant 0 : i32
    return %c0_i32, %arg0 : i32, i32
  }
  func.func @transform_1(%arg0: i32) -> (i32, i32) {
    %c0_i32 = arith.constant 0 : i32
    %c0_i32_0 = arith.constant 0 : i32
    return %c0_i32, %arg0 : i32, i32
  }
  func.func @transform_2(%arg0: i32) -> (i32, i32) {
    %c0_i32 = arith.constant 0 : i32
    %c0_i32_0 = arith.constant 0 : i32
    %c0_i32_1 = arith.constant 0 : i32
    return %c0_i32, %c0_i32_0 : i32, i32
  }
  func.func @transform_3(%arg0: i32) -> (i32, i32) {
    %c0_i32 = arith.constant 0 : i32
    %c0_i32_0 = arith.constant 0 : i32
    %c0_i32_1 = arith.constant 0 : i32
    return %c0_i32, %c0_i32_0 : i32, i32
  }
  func.func @transform_4(%arg0: i32) -> (i32, i32) {
    %c0_i32 = arith.constant 0 : i32
    %c0_i32_0 = arith.constant 0 : i32
    %c0_i32_1 = arith.constant 0 : i32
    return %c0_i32, %c0_i32_0 : i32, i32
  }
  func.func @transform_5(%arg0: i32) -> (i32, i32) {
    %c0_i32 = arith.constant 0 : i32
    %c0_i32_0 = arith.constant 0 : i32
    %c0_i32_1 = arith.constant 0 : i32
    return %c0_i32, %c0_i32_0 : i32, i32
  }
  func.func @transform_6(%arg0: i32) -> (i32, i32) {
    %c0_i32 = arith.constant 0 : i32
    %c0_i32_0 = arith.constant 0 : i32
    %c0_i32_1 = arith.constant 0 : i32
    return %c0_i32, %c0_i32_0 : i32, i32
  }
  func.func @transform_7(%arg0: i32) -> (i32, i32) {
    %c0_i32 = arith.constant 0 : i32
    %c0_i32_0 = arith.constant 0 : i32
    %c0_i32_1 = arith.constant 0 : i32
    return %c0_i32, %c0_i32_0 : i32, i32
  }
  func.func @transform_8(%arg0: i32) -> (i32, i32) {
    %c0_i32 = arith.constant 0 : i32
    %c0_i32_0 = arith.constant 0 : i32
    %c0_i32_1 = arith.constant 0 : i32
    return %c0_i32, %c0_i32_0 : i32, i32
  }
  func.func @transform_9(%arg0: i32) -> (i32, i32) {
    %c0_i32 = arith.constant 0 : i32
    %c0_i32_0 = arith.constant 0 : i32
    return %c0_i32, %arg0 : i32, i32
  }
}

</mosaic_0001>

<llo_original>
// kernel: tpu_custom_call.1
$region0: #{tpu_custom_call.1}
  #allocation0 [shape = 'u32[]', space=smem, size = 0x4, offset = 0x4, fixed_abs, tag = 'smem constant byte address 0x4 - core index']
  #allocation1 [shape = 'u32[144,128]{1,0:T(1,128)}', space=vmem, size = 0x12000, scoped, tag = 'internal scratch']
  #allocation2 [shape = 'f32[1,1]{1,0:T(1,128)S(6)}', space=smem, size = 0x200, scoped, tag = 'scoped memory for tpu_custom_call.1']
  %s0 = inlined_call_operand.hbm [shape: s32[1,512], index: 0, kind: input, shape index: {}]
  %s1 = inlined_call_operand.hbm [shape: s32[1,512], index: 1, kind: input, shape index: {}]
  %s2 = inlined_call_operand.hbm [shape: bf16[128,128], index: 2, kind: input, shape index: {}]
  %s3 = inlined_call_operand.hbm [shape: bf16[128,128], index: 3, kind: input, shape index: {}]
  %s4 = inlined_call_operand.hbm [shape: f32[128,1], index: 4, kind: input, shape index: {}]
  %s5 = inlined_call_operand.hbm [shape: bf16[128,128], index: 5, kind: input, shape index: {}]
  %s6 = inlined_call_operand.hbm [shape: f32[128,1], index: 6, kind: input, shape index: {}]
  %s7 = inlined_call_operand.hbm [shape: bf16[1,128], index: 7, kind: input, shape index: {}]
  %s8 = inlined_call_operand.<no memory space> [shape: f32[1,1], index: 8, kind: input, shape index: {}]
  %s9 = inlined_call_operand.hbm [shape: f32[1,512], index: 9, kind: output, shape index: {}]
  %s10 = sld [smem:[#allocation0]]
  $region78: #{tpu_custom_call.1} parent=0
    _
  %s12 = ssub.s32 1, %s10
  %s13 = scalar_select 0, %s12, %s10
  %14 = sst [smem:[#allocation2]] %s8
  $region1: #{tpu_custom_call.1} parent=0
    #allocation3 [shape = 'u8[2048]{0}', space=vmem, size = 0x800, scoped, tag = 'input window, operand 0, single buffered']
    #allocation4 [shape = 's32[1]{0}', space=sflag, size = 0x4, scoped, tag = 'scoped memory for tpu_custom_call.1']
    #allocation5 [shape = 's32[1]{0}', space=sflag, size = 0x4, scoped, tag = 'scoped memory for tpu_custom_call.1']
    #allocation6 [shape = 'u8[2048]{0}', space=vmem, size = 0x800, scoped, tag = 'input window, operand 1, single buffered']
    #allocation7 [shape = 's32[1]{0}', space=sflag, size = 0x4, scoped, tag = 'scoped memory for tpu_custom_call.1']
    #allocation8 [shape = 'u8[32768]{0}', space=vmem, size = 0x8000, scoped, tag = 'input window, operand 2, single buffered']
    #allocation9 [shape = 'u8[32768]{0}', space=vmem, size = 0x8000, scoped, tag = 'input window, operand 3, single buffered']
    #allocation10 [shape = 's32[1]{0}', space=sflag, size = 0x4, scoped, tag = 'scoped memory for tpu_custom_call.1']
    #allocation11 [shape = 'u8[65536]{0}', space=vmem, size = 0x10000, scoped, tag = 'input window, operand 4, single buffered']
    #allocation12 [shape = 'u8[32768]{0}', space=vmem, size = 0x8000, scoped, tag = 'input window, operand 5, single buffered']
    #allocation13 [shape = 's32[1]{0}', space=sflag, size = 0x4, scoped, tag = 'scoped memory for tpu_custom_call.1']
    #allocation14 [shape = 'u8[65536]{0}', space=vmem, size = 0x10000, scoped, tag = 'input window, operand 6, single buffered']
    #allocation15 [shape = 'u8[512]{0}', space=vmem, size = 0x400, scoped, tag = 'input window, operand 7, single buffered']
    #allocation16 [shape = 's32[1]{0}', space=sflag, size = 0x4, scoped, tag = 'scoped memory for tpu_custom_call.1']
    #allocation17 [shape = 'u8[2048]{0}', space=vmem, size = 0x800, scoped, tag = 'output window, operand 0, single buffered']
    %15 = vsyncpa [#allocation4], 0
    %16 = vsyncpa [#allocation7], 0
    %17 = vsyncpa [#allocation10], 0
    %18 = vsyncpa [#allocation13], 0
    %19 = vsyncpa [#allocation16], 0
    %20 = vsyncpa [#allocation5], 0
    // Predicated region
    $region2: #{tpu_custom_call.1} parent=1 // pred_check
      _
    $region3: #{tpu_custom_call.1} parent=1 // pred_check_branch
      %22 = sbr.rel (0) target = $region5
    $region4: #{tpu_custom_call.1} parent=1 // pred_region
      %s24 = ssub.s32 64, 64
      %25 = vsyncadd [#allocation4], %s24
      %s27 = sshll.u32 [#allocation3], 4
      %s28 = int_to_ptr.vmem [resolvable:$true] %s27
      %30 = dma.hbm_to_vmem [thread:$0]  %s0, 64, %s28, [#allocation4]
    $region5: #{tpu_custom_call.1} parent=1 // pred_fallthru
      _
    // Predicated region
    $region6: #{tpu_custom_call.1} parent=1 // pred_check
      _
    $region7: #{tpu_custom_call.1} parent=1 // pred_check_branch
      %32 = sbr.rel (0) target = $region9
    $region8: #{tpu_custom_call.1} parent=1 // pred_region
      %s34 = ssub.s32 64, 64
      %35 = vsyncadd [#allocation7], %s34
      %s37 = sshll.u32 [#allocation6], 4
      %s38 = int_to_ptr.vmem [resolvable:$true] %s37
      %40 = dma.hbm_to_vmem [thread:$0]  %s1, 64, %s38, [#allocation7]
    $region9: #{tpu_custom_call.1} parent=1 // pred_fallthru
      _
    // Predicated region
    $region10: #{tpu_custom_call.1} parent=1 // pred_check
      _
    $region11: #{tpu_custom_call.1} parent=1 // pred_check_branch
      %42 = sbr.rel (0) target = $region13
    $region12: #{tpu_custom_call.1} parent=1 // pred_region
      %s44 = ssub.s32 1024, 1024
      %45 = vsyncadd [#allocation7], %s44
      %s46 = sshll.u32 [#allocation8], 4
      %s47 = int_to_ptr.vmem [resolvable:$true] %s46
      %52 = dma.hbm_to_vmem [thread:$0]  %s2, 1024, %s47, [#allocation7], 64, 64, 4
    $region13: #{tpu_custom_call.1} parent=1 // pred_fallthru
      _
    // Predicated region
    $region14: #{tpu_custom_call.1} parent=1 // pred_check
      _
    $region15: #{tpu_custom_call.1} parent=1 // pred_check_branch
      %54 = sbr.rel (0) target = $region17
    $region16: #{tpu_custom_call.1} parent=1 // pred_region
      %s56 = ssub.s32 1024, 1024
      %57 = vsyncadd [#allocation10], %s56
      %s58 = sshll.u32 [#allocation9], 4
      %s59 = int_to_ptr.vmem [resolvable:$true] %s58
      %64 = dma.hbm_to_vmem [thread:$0]  %s3, 1024, %s59, [#allocation10], 64, 64, 4
    $region17: #{tpu_custom_call.1} parent=1 // pred_fallthru
      _
    // Predicated region
    $region18: #{tpu_custom_call.1} parent=1 // pred_check
      _
    $region19: #{tpu_custom_call.1} parent=1 // pred_check_branch
      %66 = sbr.rel (0) target = $region21
    $region20: #{tpu_custom_call.1} parent=1 // pred_region
      %s68 = ssub.s32 2048, 2048
      %69 = vsyncadd [#allocation10], %s68
      %s70 = sshll.u32 [#allocation11], 4
      %s71 = int_to_ptr.vmem [resolvable:$true] %s70
      %76 = dma.hbm_to_vmem [thread:$0]  %s4, 2048, %s71, [#allocation10], 128, 128, 8
    $region21: #{tpu_custom_call.1} parent=1 // pred_fallthru
      _
    // Predicated region
    $region22: #{tpu_custom_call.1} parent=1 // pred_check
      _
    $region23: #{tpu_custom_call.1} parent=1 // pred_check_branch
      %78 = sbr.rel (0) target = $region25
    $region24: #{tpu_custom_call.1} parent=1 // pred_region
      %s80 = ssub.s32 1024, 1024
      %81 = vsyncadd [#allocation13], %s80
      %s82 = sshll.u32 [#allocation12], 4
      %s83 = int_to_ptr.vmem [resolvable:$true] %s82
      %88 = dma.hbm_to_vmem [thread:$0]  %s5, 1024, %s83, [#allocation13], 64, 64, 4
    $region25: #{tpu_custom_call.1} parent=1 // pred_fallthru
      _
    // Predicated region
    $region26: #{tpu_custom_call.1} parent=1 // pred_check
      _
    $region27: #{tpu_custom_call.1} parent=1 // pred_check_branch
      %90 = sbr.rel (0) target = $region29
    $region28: #{tpu_custom_call.1} parent=1 // pred_region
      %s92 = ssub.s32 2048, 2048
      %93 = vsyncadd [#allocation13], %s92
      %s94 = sshll.u32 [#allocation14], 4
      %s95 = int_to_ptr.vmem [resolvable:$true] %s94
      %100 = dma.hbm_to_vmem [thread:$0]  %s6, 2048, %s95, [#allocation13], 128, 128, 8
    $region29: #{tpu_custom_call.1} parent=1 // pred_fallthru
      _
    // Predicated region
    $region30: #{tpu_custom_call.1} parent=1 // pred_check
      _
    $region31: #{tpu_custom_call.1} parent=1 // pred_check_branch
      %102 = sbr.rel (0) target = $region33
    $region32: #{tpu_custom_call.1} parent=1 // pred_region
      %s104 = ssub.s32 16, 16
      %105 = vsyncadd [#allocation16], %s104
      %s107 = sshll.u32 [#allocation15], 4
      %s108 = int_to_ptr.vmem [resolvable:$true] %s107
      %110 = dma.hbm_to_vmem [thread:$0]  %s7, 16, %s108, [#allocation16]
    $region33: #{tpu_custom_call.1} parent=1 // pred_fallthru
      _
    // Predicated region
    $region34: #{tpu_custom_call.1} parent=1 // pred_check
      _
    $region35: #{tpu_custom_call.1} parent=1 // pred_check_branch
      %112 = sbr.rel (0) target = $region37
    $region36: #{tpu_custom_call.1} parent=1 // pred_region
      _
    $region37: #{tpu_custom_call.1} parent=1 // pred_fallthru
      _
    // Predicated region
    $region38: #{tpu_custom_call.1} parent=1 // pred_check
      _
    $region39: #{tpu_custom_call.1} parent=1 // pred_check_branch
      %114 = sbr.rel (0) target = $region41
    $region40: #{tpu_custom_call.1} parent=1 // pred_region
      %115 = dma.done [#allocation4], 64
    $region41: #{tpu_custom_call.1} parent=1 // pred_fallthru
      _
    // Predicated region
    $region42: #{tpu_custom_call.1} parent=1 // pred_check
      _
    $region43: #{tpu_custom_call.1} parent=1 // pred_check_branch
      %117 = sbr.rel (0) target = $region45
    $region44: #{tpu_custom_call.1} parent=1 // pred_region
      %118 = dma.done [#allocation7], 64
    $region45: #{tpu_custom_call.1} parent=1 // pred_fallthru
      _
    // Predicated region
    $region46: #{tpu_custom_call.1} parent=1 // pred_check
      _
    $region47: #{tpu_custom_call.1} parent=1 // pred_check_branch
      %120 = sbr.rel (0) target = $region49
    $region48: #{tpu_custom_call.1} parent=1 // pred_region
      %121 = dma.done [#allocation7], 1024
    $region49: #{tpu_custom_call.1} parent=1 // pred_fallthru
      _
    // Predicated region
    $region50: #{tpu_custom_call.1} parent=1 // pred_check
      _
    $region51: #{tpu_custom_call.1} parent=1 // pred_check_branch
      %123 = sbr.rel (0) target = $region53
    $region52: #{tpu_custom_call.1} parent=1 // pred_region
      %124 = dma.done [#allocation10], 1024
    $region53: #{tpu_custom_call.1} parent=1 // pred_fallthru
      _
    // Predicated region
    $region54: #{tpu_custom_call.1} parent=1 // pred_check
      _
    $region55: #{tpu_custom_call.1} parent=1 // pred_check_branch
      %126 = sbr.rel (0) target = $region57
    $region56: #{tpu_custom_call.1} parent=1 // pred_region
      %127 = dma.done [#allocation10], 2048
    $region57: #{tpu_custom_call.1} parent=1 // pred_fallthru
      _
    // Predicated region
    $region58: #{tpu_custom_call.1} parent=1 // pred_check
      _
    $region59: #{tpu_custom_call.1} parent=1 // pred_check_branch
      %129 = sbr.rel (0) target = $region61
    $region60: #{tpu_custom_call.1} parent=1 // pred_region
      %130 = dma.done [#allocation13], 1024
    $region61: #{tpu_custom_call.1} parent=1 // pred_fallthru
      _
    // Predicated region
    $region62: #{tpu_custom_call.1} parent=1 // pred_check
      _
    $region63: #{tpu_custom_call.1} parent=1 // pred_check_branch
      %132 = sbr.rel (0) target = $region65
    $region64: #{tpu_custom_call.1} parent=1 // pred_region
      %133 = dma.done [#allocation13], 2048
    $region65: #{tpu_custom_call.1} parent=1 // pred_fallthru
      _
    // Predicated region
    $region66: #{tpu_custom_call.1} parent=1 // pred_check
      _
    $region67: #{tpu_custom_call.1} parent=1 // pred_check_branch
      %135 = sbr.rel (0) target = $region69
    $region68: #{tpu_custom_call.1} parent=1 // pred_region
      %136 = dma.done [#allocation16], 16
    $region69: #{tpu_custom_call.1} parent=1 // pred_fallthru
      _
    %v138 = vlaneseq
    %v139 = vshrl.u32 %v138, 7
    %v140 = vadd.s32 %v139, 8
    %v141 = vadd.s32 %v139, 16
    %v142 = vadd.s32 %v139, 24
    %v143 = vadd.s32 %v139, 32
    %v144 = vadd.s32 %v139, 40
    %v145 = vadd.s32 %v139, 48
    %v146 = vadd.s32 %v139, 56
    %v147 = vadd.s32 %v139, 64
    %v148 = vadd.s32 %v139, 72
    %v149 = vadd.s32 %v139, 80
    %v150 = vadd.s32 %v139, 88
    %v151 = vadd.s32 %v139, 96
    %v152 = vadd.s32 %v139, 104
    %v153 = vadd.s32 %v139, 112
    %v154 = vadd.s32 %v139, 120
    %v155 = vld [vmem:[#allocation3] sm:$0xf]
    %v156 = vlaneseq
    %v157 = vshrl.u32 %v156, 7
    %v158 = vsub.s32 0, %v157
    %v159 = vrot.slane %v155, %v158
    %v160 = vlaneseq
    %v161 = vshrl.u32 %v160, 7
    %v162 = vsub.s32 1, %v161
    %v163 = vrot.slane %v155, %v162
    %v164 = vlaneseq
    %v165 = vshrl.u32 %v164, 7
    %v166 = vsub.s32 2, %v165
    %v167 = vrot.slane %v155, %v166
    %v168 = vlaneseq
    %v169 = vshrl.u32 %v168, 7
    %v170 = vsub.s32 3, %v169
    %v171 = vrot.slane %v155, %v170
    %vm172 = vcmp.eq.s32.totalorder %v139, %v159
    %vm173 = vcmp.eq.s32.totalorder %v139, %v163
    %vm174 = vcmp.eq.s32.totalorder %v139, %v167
    %vm175 = vcmp.eq.s32.totalorder %v139, %v171
    %vm176 = vcmp.eq.s32.totalorder %v140, %v159
    %vm177 = vcmp.eq.s32.totalorder %v140, %v163
    %vm178 = vcmp.eq.s32.totalorder %v140, %v167
    %vm179 = vcmp.eq.s32.totalorder %v140, %v171
    %vm180 = vcmp.eq.s32.totalorder %v141, %v159
    %vm181 = vcmp.eq.s32.totalorder %v141, %v163
    %vm182 = vcmp.eq.s32.totalorder %v141, %v167
    %vm183 = vcmp.eq.s32.totalorder %v141, %v171
    %vm184 = vcmp.eq.s32.totalorder %v142, %v159
    %vm185 = vcmp.eq.s32.totalorder %v142, %v163
    %vm186 = vcmp.eq.s32.totalorder %v142, %v167
    %vm187 = vcmp.eq.s32.totalorder %v142, %v171
    %vm188 = vcmp.eq.s32.totalorder %v143, %v159
    %vm189 = vcmp.eq.s32.totalorder %v143, %v163
    %vm190 = vcmp.eq.s32.totalorder %v143, %v167
    %vm191 = vcmp.eq.s32.totalorder %v143, %v171
    %vm192 = vcmp.eq.s32.totalorder %v144, %v159
    %vm193 = vcmp.eq.s32.totalorder %v144, %v163
    %vm194 = vcmp.eq.s32.totalorder %v144, %v167
    %vm195 = vcmp.eq.s32.totalorder %v144, %v171
    %vm196 = vcmp.eq.s32.totalorder %v145, %v159
    %vm197 = vcmp.eq.s32.totalorder %v145, %v163
    %vm198 = vcmp.eq.s32.totalorder %v145, %v167
    %vm199 = vcmp.eq.s32.totalorder %v145, %v171
    %vm200 = vcmp.eq.s32.totalorder %v146, %v159
    %vm201 = vcmp.eq.s32.totalorder %v146, %v163
    %vm202 = vcmp.eq.s32.totalorder %v146, %v167
    %vm203 = vcmp.eq.s32.totalorder %v146, %v171
    %vm204 = vcmp.eq.s32.totalorder %v147, %v159
    %vm205 = vcmp.eq.s32.totalorder %v147, %v163
    %vm206 = vcmp.eq.s32.totalorder %v147, %v167
    %vm207 = vcmp.eq.s32.totalorder %v147, %v171
    %vm208 = vcmp.eq.s32.totalorder %v148, %v159
    %vm209 = vcmp.eq.s32.totalorder %v148, %v163
    %vm210 = vcmp.eq.s32.totalorder %v148, %v167
    %vm211 = vcmp.eq.s32.totalorder %v148, %v171
    %vm212 = vcmp.eq.s32.totalorder %v149, %v159
    %vm213 = vcmp.eq.s32.totalorder %v149, %v163
    %vm214 = vcmp.eq.s32.totalorder %v149, %v167
    %vm215 = vcmp.eq.s32.totalorder %v149, %v171
    %vm216 = vcmp.eq.s32.totalorder %v150, %v159
    %vm217 = vcmp.eq.s32.totalorder %v150, %v163
    %vm218 = vcmp.eq.s32.totalorder %v150, %v167
    %vm219 = vcmp.eq.s32.totalorder %v150, %v171
    %vm220 = vcmp.eq.s32.totalorder %v151, %v159
    %vm221 = vcmp.eq.s32.totalorder %v151, %v163
    %vm222 = vcmp.eq.s32.totalorder %v151, %v167
    %vm223 = vcmp.eq.s32.totalorder %v151, %v171
    %vm224 = vcmp.eq.s32.totalorder %v152, %v159
    %vm225 = vcmp.eq.s32.totalorder %v152, %v163
    %vm226 = vcmp.eq.s32.totalorder %v152, %v167
    %vm227 = vcmp.eq.s32.totalorder %v152, %v171
    %vm228 = vcmp.eq.s32.totalorder %v153, %v159
    %vm229 = vcmp.eq.s32.totalorder %v153, %v163
    %vm230 = vcmp.eq.s32.totalorder %v153, %v167
    %vm231 = vcmp.eq.s32.totalorder %v153, %v171
    %vm232 = vcmp.eq.s32.totalorder %v154, %v159
    %vm233 = vcmp.eq.s32.totalorder %v154, %v163
    %vm234 = vcmp.eq.s32.totalorder %v154, %v167
    %vm235 = vcmp.eq.s32.totalorder %v154, %v171
    %v236 = vsel %vm172, 1.0, 0.0
    %v237 = vsel %vm173, 1.0, 0.0
    %v238 = vsel %vm174, 1.0, 0.0
    %v239 = vsel %vm175, 1.0, 0.0
    %v240 = vsel %vm176, 1.0, 0.0
    %v241 = vsel %vm177, 1.0, 0.0
    %v242 = vsel %vm178, 1.0, 0.0
    %v243 = vsel %vm179, 1.0, 0.0
    %v244 = vsel %vm180, 1.0, 0.0
    %v245 = vsel %vm181, 1.0, 0.0
    %v246 = vsel %vm182, 1.0, 0.0
    %v247 = vsel %vm183, 1.0, 0.0
    %v248 = vsel %vm184, 1.0, 0.0
    %v249 = vsel %vm185, 1.0, 0.0
    %v250 = vsel %vm186, 1.0, 0.0
    %v251 = vsel %vm187, 1.0, 0.0
    %v252 = vsel %vm188, 1.0, 0.0
    %v253 = vsel %vm189, 1.0, 0.0
    %v254 = vsel %vm190, 1.0, 0.0
    %v255 = vsel %vm191, 1.0, 0.0
    %v256 = vsel %vm192, 1.0, 0.0
    %v257 = vsel %vm193, 1.0, 0.0
    %v258 = vsel %vm194, 1.0, 0.0
    %v259 = vsel %vm195, 1.0, 0.0
    %v260 = vsel %vm196, 1.0, 0.0
    %v261 = vsel %vm197, 1.0, 0.0
    %v262 = vsel %vm198, 1.0, 0.0
    %v263 = vsel %vm199, 1.0, 0.0
    %v264 = vsel %vm200, 1.0, 0.0
    %v265 = vsel %vm201, 1.0, 0.0
    %v266 = vsel %vm202, 1.0, 0.0
    %v267 = vsel %vm203, 1.0, 0.0
    %v268 = vsel %vm204, 1.0, 0.0
    %v269 = vsel %vm205, 1.0, 0.0
    %v270 = vsel %vm206, 1.0, 0.0
    %v271 = vsel %vm207, 1.0, 0.0
    %v272 = vsel %vm208, 1.0, 0.0
    %v273 = vsel %vm209, 1.0, 0.0
    %v274 = vsel %vm210, 1.0, 0.0
    %v275 = vsel %vm211, 1.0, 0.0
    %v276 = vsel %vm212, 1.0, 0.0
    %v277 = vsel %vm213, 1.0, 0.0
    %v278 = vsel %vm214, 1.0, 0.0
    %v279 = vsel %vm215, 1.0, 0.0
    %v280 = vsel %vm216, 1.0, 0.0
    %v281 = vsel %vm217, 1.0, 0.0
    %v282 = vsel %vm218, 1.0, 0.0
    %v283 = vsel %vm219, 1.0, 0.0
    %v284 = vsel %vm220, 1.0, 0.0
    %v285 = vsel %vm221, 1.0, 0.0
    %v286 = vsel %vm222, 1.0, 0.0
    %v287 = vsel %vm223, 1.0, 0.0
    %v288 = vsel %vm224, 1.0, 0.0
    %v289 = vsel %vm225, 1.0, 0.0
    %v290 = vsel %vm226, 1.0, 0.0
    %v291 = vsel %vm227, 1.0, 0.0
    %v292 = vsel %vm228, 1.0, 0.0
    %v293 = vsel %vm229, 1.0, 0.0
    %v294 = vsel %vm230, 1.0, 0.0
    %v295 = vsel %vm231, 1.0, 0.0
    %v296 = vsel %vm232, 1.0, 0.0
    %v297 = vsel %vm233, 1.0, 0.0
    %v298 = vsel %vm234, 1.0, 0.0
    %v299 = vsel %vm235, 1.0, 0.0
    %v300 = vpack.c.bf16 %v240, %v236
    %v301 = vpack.c.bf16 %v241, %v237
    %v302 = vpack.c.bf16 %v242, %v238
    %v303 = vpack.c.bf16 %v243, %v239
    %v304 = vpack.c.bf16 %v248, %v244
    %v305 = vpack.c.bf16 %v249, %v245
    %v306 = vpack.c.bf16 %v250, %v246
    %v307 = vpack.c.bf16 %v251, %v247
    %v308 = vpack.c.bf16 %v256, %v252
    %v309 = vpack.c.bf16 %v257, %v253
    %v310 = vpack.c.bf16 %v258, %v254
    %v311 = vpack.c.bf16 %v259, %v255
    %v312 = vpack.c.bf16 %v264, %v260
    %v313 = vpack.c.bf16 %v265, %v261
    %v314 = vpack.c.bf16 %v266, %v262
    %v315 = vpack.c.bf16 %v267, %v263
    %v316 = vpack.c.bf16 %v272, %v268
    %v317 = vpack.c.bf16 %v273, %v269
    %v318 = vpack.c.bf16 %v274, %v270
    %v319 = vpack.c.bf16 %v275, %v271
    %v320 = vpack.c.bf16 %v280, %v276
    %v321 = vpack.c.bf16 %v281, %v277
    %v322 = vpack.c.bf16 %v282, %v278
    %v323 = vpack.c.bf16 %v283, %v279
    %v324 = vpack.c.bf16 %v288, %v284
    %v325 = vpack.c.bf16 %v289, %v285
    %v326 = vpack.c.bf16 %v290, %v286
    %v327 = vpack.c.bf16 %v291, %v287
    %v328 = vpack.c.bf16 %v296, %v292
    %v329 = vpack.c.bf16 %v297, %v293
    %v330 = vpack.c.bf16 %v298, %v294
    %v331 = vpack.c.bf16 %v299, %v295
    %v332 = vld [vmem:[#allocation6] sm:$0xf]
    %v333 = vlaneseq
    %v334 = vshrl.u32 %v333, 7
    %v335 = vsub.s32 0, %v334
    %v336 = vrot.slane %v332, %v335
    %v337 = vlaneseq
    %v338 = vshrl.u32 %v337, 7
    %v339 = vsub.s32 1, %v338
    %v340 = vrot.slane %v332, %v339
    %v341 = vlaneseq
    %v342 = vshrl.u32 %v341, 7
    %v343 = vsub.s32 2, %v342
    %v344 = vrot.slane %v332, %v343
    %v345 = vlaneseq
    %v346 = vshrl.u32 %v345, 7
    %v347 = vsub.s32 3, %v346
    %v348 = vrot.slane %v332, %v347
    %vm349 = vcmp.eq.s32.totalorder %v139, %v336
    %vm350 = vcmp.eq.s32.totalorder %v139, %v340
    %vm351 = vcmp.eq.s32.totalorder %v139, %v344
    %vm352 = vcmp.eq.s32.totalorder %v139, %v348
    %vm353 = vcmp.eq.s32.totalorder %v140, %v336
    %vm354 = vcmp.eq.s32.totalorder %v140, %v340
    %vm355 = vcmp.eq.s32.totalorder %v140, %v344
    %vm356 = vcmp.eq.s32.totalorder %v140, %v348
    %vm357 = vcmp.eq.s32.totalorder %v141, %v336
    %vm358 = vcmp.eq.s32.totalorder %v141, %v340
    %vm359 = vcmp.eq.s32.totalorder %v141, %v344
    %vm360 = vcmp.eq.s32.totalorder %v141, %v348
    %vm361 = vcmp.eq.s32.totalorder %v142, %v336
    %vm362 = vcmp.eq.s32.totalorder %v142, %v340
    %vm363 = vcmp.eq.s32.totalorder %v142, %v344
    %vm364 = vcmp.eq.s32.totalorder %v142, %v348
    %vm365 = vcmp.eq.s32.totalorder %v143, %v336
    %vm366 = vcmp.eq.s32.totalorder %v143, %v340
    %vm367 = vcmp.eq.s32.totalorder %v143, %v344
    %vm368 = vcmp.eq.s32.totalorder %v143, %v348
    %vm369 = vcmp.eq.s32.totalorder %v144, %v336
    %vm370 = vcmp.eq.s32.totalorder %v144, %v340
    %vm371 = vcmp.eq.s32.totalorder %v144, %v344
    %vm372 = vcmp.eq.s32.totalorder %v144, %v348
    %vm373 = vcmp.eq.s32.totalorder %v145, %v336
    %vm374 = vcmp.eq.s32.totalorder %v145, %v340
    %vm375 = vcmp.eq.s32.totalorder %v145, %v344
    %vm376 = vcmp.eq.s32.totalorder %v145, %v348
    %vm377 = vcmp.eq.s32.totalorder %v146, %v336
    %vm378 = vcmp.eq.s32.totalorder %v146, %v340
    %vm379 = vcmp.eq.s32.totalorder %v146, %v344
    %vm380 = vcmp.eq.s32.totalorder %v146, %v348
    %vm381 = vcmp.eq.s32.totalorder %v147, %v336
    %vm382 = vcmp.eq.s32.totalorder %v147, %v340
    %vm383 = vcmp.eq.s32.totalorder %v147, %v344
    %vm384 = vcmp.eq.s32.totalorder %v147, %v348
    %vm385 = vcmp.eq.s32.totalorder %v148, %v336
    %vm386 = vcmp.eq.s32.totalorder %v148, %v340
    %vm387 = vcmp.eq.s32.totalorder %v148, %v344
    %vm388 = vcmp.eq.s32.totalorder %v148, %v348
    %vm389 = vcmp.eq.s32.totalorder %v149, %v336
    %vm390 = vcmp.eq.s32.totalorder %v149, %v340
    %vm391 = vcmp.eq.s32.totalorder %v149, %v344
    %vm392 = vcmp.eq.s32.totalorder %v149, %v348
    %vm393 = vcmp.eq.s32.totalorder %v150, %v336
    %vm394 = vcmp.eq.s32.totalorder %v150, %v340
    %vm395 = vcmp.eq.s32.totalorder %v150, %v344
    %vm396 = vcmp.eq.s32.totalorder %v150, %v348
    %vm397 = vcmp.eq.s32.totalorder %v151, %v336
    %vm398 = vcmp.eq.s32.totalorder %v151, %v340
    %vm399 = vcmp.eq.s32.totalorder %v151, %v344
    %vm400 = vcmp.eq.s32.totalorder %v151, %v348
    %vm401 = vcmp.eq.s32.totalorder %v152, %v336
    %vm402 = vcmp.eq.s32.totalorder %v152, %v340
    %vm403 = vcmp.eq.s32.totalorder %v152, %v344
    %vm404 = vcmp.eq.s32.totalorder %v152, %v348
    %vm405 = vcmp.eq.s32.totalorder %v153, %v336
    %vm406 = vcmp.eq.s32.totalorder %v153, %v340
    %vm407 = vcmp.eq.s32.totalorder %v153, %v344
    %vm408 = vcmp.eq.s32.totalorder %v153, %v348
    %vm409 = vcmp.eq.s32.totalorder %v154, %v336
    %vm410 = vcmp.eq.s32.totalorder %v154, %v340
    %vm411 = vcmp.eq.s32.totalorder %v154, %v344
    %vm412 = vcmp.eq.s32.totalorder %v154, %v348
    %v413 = vsel %vm349, 1.0, 0.0
    %v414 = vsel %vm350, 1.0, 0.0
    %v415 = vsel %vm351, 1.0, 0.0
    %v416 = vsel %vm352, 1.0, 0.0
    %v417 = vsel %vm353, 1.0, 0.0
    %v418 = vsel %vm354, 1.0, 0.0
    %v419 = vsel %vm355, 1.0, 0.0
    %v420 = vsel %vm356, 1.0, 0.0
    %v421 = vsel %vm357, 1.0, 0.0
    %v422 = vsel %vm358, 1.0, 0.0
    %v423 = vsel %vm359, 1.0, 0.0
    %v424 = vsel %vm360, 1.0, 0.0
    %v425 = vsel %vm361, 1.0, 0.0
    %v426 = vsel %vm362, 1.0, 0.0
    %v427 = vsel %vm363, 1.0, 0.0
    %v428 = vsel %vm364, 1.0, 0.0
    %v429 = vsel %vm365, 1.0, 0.0
    %v430 = vsel %vm366, 1.0, 0.0
    %v431 = vsel %vm367, 1.0, 0.0
    %v432 = vsel %vm368, 1.0, 0.0
    %v433 = vsel %vm369, 1.0, 0.0
    %v434 = vsel %vm370, 1.0, 0.0
    %v435 = vsel %vm371, 1.0, 0.0
    %v436 = vsel %vm372, 1.0, 0.0
    %v437 = vsel %vm373, 1.0, 0.0
    %v438 = vsel %vm374, 1.0, 0.0
    %v439 = vsel %vm375, 1.0, 0.0
    %v440 = vsel %vm376, 1.0, 0.0
    %v441 = vsel %vm377, 1.0, 0.0
    %v442 = vsel %vm378, 1.0, 0.0
    %v443 = vsel %vm379, 1.0, 0.0
    %v444 = vsel %vm380, 1.0, 0.0
    %v445 = vsel %vm381, 1.0, 0.0
    %v446 = vsel %vm382, 1.0, 0.0
    %v447 = vsel %vm383, 1.0, 0.0
    %v448 = vsel %vm384, 1.0, 0.0
    %v449 = vsel %vm385, 1.0, 0.0
    %v450 = vsel %vm386, 1.0, 0.0
    %v451 = vsel %vm387, 1.0, 0.0
    %v452 = vsel %vm388, 1.0, 0.0
    %v453 = vsel %vm389, 1.0, 0.0
    %v454 = vsel %vm390, 1.0, 0.0
    %v455 = vsel %vm391, 1.0, 0.0
    %v456 = vsel %vm392, 1.0, 0.0
    %v457 = vsel %vm393, 1.0, 0.0
    %v458 = vsel %vm394, 1.0, 0.0
    %v459 = vsel %vm395, 1.0, 0.0
    %v460 = vsel %vm396, 1.0, 0.0
    %v461 = vsel %vm397, 1.0, 0.0
    %v462 = vsel %vm398, 1.0, 0.0
    %v463 = vsel %vm399, 1.0, 0.0
    %v464 = vsel %vm400, 1.0, 0.0
    %v465 = vsel %vm401, 1.0, 0.0
    %v466 = vsel %vm402, 1.0, 0.0
    %v467 = vsel %vm403, 1.0, 0.0
    %v468 = vsel %vm404, 1.0, 0.0
    %v469 = vsel %vm405, 1.0, 0.0
    %v470 = vsel %vm406, 1.0, 0.0
    %v471 = vsel %vm407, 1.0, 0.0
    %v472 = vsel %vm408, 1.0, 0.0
    %v473 = vsel %vm409, 1.0, 0.0
    %v474 = vsel %vm410, 1.0, 0.0
    %v475 = vsel %vm411, 1.0, 0.0
    %v476 = vsel %vm412, 1.0, 0.0
    %v477 = vpack.c.bf16 %v417, %v413
    %v478 = vpack.c.bf16 %v418, %v414
    %v479 = vpack.c.bf16 %v419, %v415
    %v480 = vpack.c.bf16 %v420, %v416
    %v481 = vpack.c.bf16 %v425, %v421
    %v482 = vpack.c.bf16 %v426, %v422
    %v483 = vpack.c.bf16 %v427, %v423
    %v484 = vpack.c.bf16 %v428, %v424
    %v485 = vpack.c.bf16 %v433, %v429
    %v486 = vpack.c.bf16 %v434, %v430
    %v487 = vpack.c.bf16 %v435, %v431
    %v488 = vpack.c.bf16 %v436, %v432
    %v489 = vpack.c.bf16 %v441, %v437
    %v490 = vpack.c.bf16 %v442, %v438
    %v491 = vpack.c.bf16 %v443, %v439
    %v492 = vpack.c.bf16 %v444, %v440
    %v493 = vpack.c.bf16 %v449, %v445
    %v494 = vpack.c.bf16 %v450, %v446
    %v495 = vpack.c.bf16 %v451, %v447
    %v496 = vpack.c.bf16 %v452, %v448
    %v497 = vpack.c.bf16 %v457, %v453
    %v498 = vpack.c.bf16 %v458, %v454
    %v499 = vpack.c.bf16 %v459, %v455
    %v500 = vpack.c.bf16 %v460, %v456
    %v501 = vpack.c.bf16 %v465, %v461
    %v502 = vpack.c.bf16 %v466, %v462
    %v503 = vpack.c.bf16 %v467, %v463
    %v504 = vpack.c.bf16 %v468, %v464
    %v505 = vpack.c.bf16 %v473, %v469
    %v506 = vpack.c.bf16 %v474, %v470
    %v507 = vpack.c.bf16 %v475, %v471
    %v508 = vpack.c.bf16 %v476, %v472
    %v509 = vld [vmem:[#allocation8] sm:$0xf]
    %v510 = vld [vmem:[#allocation8 + $0x4] sm:$0xf]
    %v511 = vld [vmem:[#allocation8 + $0x8] sm:$0xf]
    %v512 = vld [vmem:[#allocation8 + $0xc] sm:$0xf]
    %v513 = vld [vmem:[#allocation8 + $0x10] sm:$0xf]
    %v514 = vld [vmem:[#allocation8 + $0x14] sm:$0xf]
    %v515 = vld [vmem:[#allocation8 + $0x18] sm:$0xf]
    %v516 = vld [vmem:[#allocation8 + $0x1c] sm:$0xf]
    %v517 = vld [vmem:[#allocation8 + $0x20] sm:$0xf]
    %v518 = vld [vmem:[#allocation8 + $0x24] sm:$0xf]
    %v519 = vld [vmem:[#allocation8 + $0x28] sm:$0xf]
    %v520 = vld [vmem:[#allocation8 + $0x2c] sm:$0xf]
    %v521 = vld [vmem:[#allocation8 + $0x30] sm:$0xf]
    %v522 = vld [vmem:[#allocation8 + $0x34] sm:$0xf]
    %v523 = vld [vmem:[#allocation8 + $0x38] sm:$0xf]
    %v524 = vld [vmem:[#allocation8 + $0x3c] sm:$0xf]
    %v525 = vld [vmem:[#allocation9] sm:$0xf]
    %v526 = vld [vmem:[#allocation9 + $0x4] sm:$0xf]
    %v527 = vld [vmem:[#allocation9 + $0x8] sm:$0xf]
    %v528 = vld [vmem:[#allocation9 + $0xc] sm:$0xf]
    %v529 = vld [vmem:[#allocation9 + $0x10] sm:$0xf]
    %v530 = vld [vmem:[#allocation9 + $0x14] sm:$0xf]
    %v531 = vld [vmem:[#allocation9 + $0x18] sm:$0xf]
    %v532 = vld [vmem:[#allocation9 + $0x1c] sm:$0xf]
    %v533 = vld [vmem:[#allocation9 + $0x20] sm:$0xf]
    %v534 = vld [vmem:[#allocation9 + $0x24] sm:$0xf]
    %v535 = vld [vmem:[#allocation9 + $0x28] sm:$0xf]
    %v536 = vld [vmem:[#allocation9 + $0x2c] sm:$0xf]
    %v537 = vld [vmem:[#allocation9 + $0x30] sm:$0xf]
    %v538 = vld [vmem:[#allocation9 + $0x34] sm:$0xf]
    %v539 = vld [vmem:[#allocation9 + $0x38] sm:$0xf]
    %v540 = vld [vmem:[#allocation9 + $0x3c] sm:$0xf]
    %v557 = vunpack.c.l.b16 %v525
    %v558 = vunpack.c.l.b16 %v526
    %v559 = vunpack.c.l.b16 %v527
    %v560 = vunpack.c.l.b16 %v528
    %v561 = vunpack.c.l.b16 %v529
    %v562 = vunpack.c.l.b16 %v530
    %v563 = vunpack.c.l.b16 %v531
    %v564 = vunpack.c.l.b16 %v532
    %v565 = vunpack.c.l.b16 %v533
    %v566 = vunpack.c.l.b16 %v534
    %v567 = vunpack.c.l.b16 %v535
    %v568 = vunpack.c.l.b16 %v536
    %v569 = vunpack.c.l.b16 %v537
    %v570 = vunpack.c.l.b16 %v538
    %v571 = vunpack.c.l.b16 %v539
    %v572 = vunpack.c.l.b16 %v540
    %v573 = vpack.c.b16 %v558, %v557
    %v574 = vpack.c.b16 %v560, %v559
    %v575 = vpack.c.b16 %v562, %v561
    %v576 = vpack.c.b16 %v564, %v563
    %v577 = vpack.c.b16 %v566, %v565
    %v578 = vpack.c.b16 %v568, %v567
    %v579 = vpack.c.b16 %v570, %v569
    %v580 = vpack.c.b16 %v572, %v571
    %589 = vmatprep.subr.bf16.mxu0 %v478
    %590 = vmatpush1.bf16.msra.mxu0 %v477
    %591 = vmatprep.subr.bf16.mxu0 %v482
    %592 = vmatpush1.bf16.msra.mxu0 %v481
    %593 = vmatprep.subr.bf16.mxu0 %v486
    %594 = vmatpush1.bf16.msra.mxu0 %v485
    %595 = vmatprep.subr.bf16.mxu0 %v490
    %596 = vmatpush1.bf16.msra.mxu0 %v489
    %597 = vmatprep.subr.bf16.mxu0 %v494
    %598 = vmatpush1.bf16.msra.mxu0 %v493
    %599 = vmatprep.subr.bf16.mxu0 %v498
    %600 = vmatpush1.bf16.msra.mxu0 %v497
    %601 = vmatprep.subr.bf16.mxu0 %v502
    %602 = vmatpush1.bf16.msra.mxu0 %v501
    %603 = vmatprep.subr.bf16.mxu0 %v506
    %604 = vmatpush1.bf16.msra.mxu0 %v505
    %605 = vmatprep.subr.bf16.mxu0 0
    %606 = vmatpush1.bf16.msra.mxu0 0
    %607 = vmatprep.subr.bf16.mxu0 0
    %608 = vmatpush1.bf16.msra.mxu0 0
    %609 = vmatprep.subr.bf16.mxu0 0
    %610 = vmatpush1.bf16.msra.mxu0 0
    %611 = vmatprep.subr.bf16.mxu0 0
    %612 = vmatpush1.bf16.msra.mxu0 0
    %613 = vmatprep.subr.bf16.mxu0 0
    %614 = vmatpush1.bf16.msra.mxu0 0
    %615 = vmatprep.subr.bf16.mxu0 0
    %616 = vmatpush1.bf16.msra.mxu0 0
    %617 = vmatprep.subr.bf16.mxu0 0
    %618 = vmatpush1.bf16.msra.mxu0 0
    %619 = vmatprep.subr.bf16.mxu0 0
    %620 = vmatpush1.bf16.msra.mxu0 0
    %621 = vmatprep.mubr.bf16.mxu0 0
    %622 = vmatmul.mubr.bf16.gmra.mrb[0].mxu0 %v573
    %v623 = vpop.f32.mrb[0].mxu0
    %v624 = vadd.f32 0.0, %v623
    %v625 = vpop.f32.mrb[0].mxu0
    %v626 = vadd.f32 0.0, %v625
    %v627 = vpop.f32.mrb[0].mxu0
    %v628 = vadd.f32 0.0, %v627
    %v629 = vpop.f32.mrb[0].mxu0
    %v630 = vadd.f32 0.0, %v629
    %631 = vmatprep.mubr.bf16.mxu0 0
    %632 = vmatmul.mubr.bf16.gmra.mrb[0].mxu0 %v574
    %v633 = vpop.f32.mrb[0].mxu0
    %v634 = vadd.f32 0.0, %v633
    %v635 = vpop.f32.mrb[0].mxu0
    %v636 = vadd.f32 0.0, %v635
    %v637 = vpop.f32.mrb[0].mxu0
    %v638 = vadd.f32 0.0, %v637
    %v639 = vpop.f32.mrb[0].mxu0
    %v640 = vadd.f32 0.0, %v639
    %641 = vmatprep.mubr.bf16.mxu0 0
    %642 = vmatmul.mubr.bf16.gmra.mrb[0].mxu0 %v575
    %v643 = vpop.f32.mrb[0].mxu0
    %v644 = vadd.f32 0.0, %v643
    %v645 = vpop.f32.mrb[0].mxu0
    %v646 = vadd.f32 0.0, %v645
    %v647 = vpop.f32.mrb[0].mxu0
    %v648 = vadd.f32 0.0, %v647
    %v649 = vpop.f32.mrb[0].mxu0
    %v650 = vadd.f32 0.0, %v649
    %651 = vmatprep.mubr.bf16.mxu0 0
    %652 = vmatmul.mubr.bf16.gmra.mrb[0].mxu0 %v576
    %v653 = vpop.f32.mrb[0].mxu0
    %v654 = vadd.f32 0.0, %v653
    %v655 = vpop.f32.mrb[0].mxu0
    %v656 = vadd.f32 0.0, %v655
    %v657 = vpop.f32.mrb[0].mxu0
    %v658 = vadd.f32 0.0, %v657
    %v659 = vpop.f32.mrb[0].mxu0
    %v660 = vadd.f32 0.0, %v659
    %661 = vmatprep.mubr.bf16.mxu0 0
    %662 = vmatmul.mubr.bf16.gmra.mrb[0].mxu0 %v577
    %v663 = vpop.f32.mrb[0].mxu0
    %v664 = vadd.f32 0.0, %v663
    %v665 = vpop.f32.mrb[0].mxu0
    %v666 = vadd.f32 0.0, %v665
    %v667 = vpop.f32.mrb[0].mxu0
    %v668 = vadd.f32 0.0, %v667
    %v669 = vpop.f32.mrb[0].mxu0
    %v670 = vadd.f32 0.0, %v669
    %671 = vmatprep.mubr.bf16.mxu0 0
    %672 = vmatmul.mubr.bf16.gmra.mrb[0].mxu0 %v578
    %v673 = vpop.f32.mrb[0].mxu0
    %v674 = vadd.f32 0.0, %v673
    %v675 = vpop.f32.mrb[0].mxu0
    %v676 = vadd.f32 0.0, %v675
    %v677 = vpop.f32.mrb[0].mxu0
    %v678 = vadd.f32 0.0, %v677
    %v679 = vpop.f32.mrb[0].mxu0
    %v680 = vadd.f32 0.0, %v679
    %681 = vmatprep.mubr.bf16.mxu0 0
    %682 = vmatmul.mubr.bf16.gmra.mrb[0].mxu0 %v579
    %v683 = vpop.f32.mrb[0].mxu0
    %v684 = vadd.f32 0.0, %v683
    %v685 = vpop.f32.mrb[0].mxu0
    %v686 = vadd.f32 0.0, %v685
    %v687 = vpop.f32.mrb[0].mxu0
    %v688 = vadd.f32 0.0, %v687
    %v689 = vpop.f32.mrb[0].mxu0
    %v690 = vadd.f32 0.0, %v689
    %691 = vmatprep.mubr.bf16.mxu0 0
    %692 = vmatmul.mubr.bf16.gmra.mrb[0].mxu0 %v580
    %v693 = vpop.f32.mrb[0].mxu0
    %v694 = vadd.f32 0.0, %v693
    %v695 = vpop.f32.mrb[0].mxu0
    %v696 = vadd.f32 0.0, %v695
    %v697 = vpop.f32.mrb[0].mxu0
    %v698 = vadd.f32 0.0, %v697
    %v699 = vpop.f32.mrb[0].mxu0
    %v700 = vadd.f32 0.0, %v699
    %701 = vdwg.mxu0
    %702 = vmatprep.subr.bf16.mxu0 %v480
    %703 = vmatpush1.bf16.msra.mxu0 %v479
    %704 = vmatprep.subr.bf16.mxu0 %v484
    %705 = vmatpush1.bf16.msra.mxu0 %v483
    %706 = vmatprep.subr.bf16.mxu0 %v488
    %707 = vmatpush1.bf16.msra.mxu0 %v487
    %708 = vmatprep.subr.bf16.mxu0 %v492
    %709 = vmatpush1.bf16.msra.mxu0 %v491
    %710 = vmatprep.subr.bf16.mxu0 %v496
    %711 = vmatpush1.bf16.msra.mxu0 %v495
    %712 = vmatprep.subr.bf16.mxu0 %v500
    %713 = vmatpush1.bf16.msra.mxu0 %v499
    %714 = vmatprep.subr.bf16.mxu0 %v504
    %715 = vmatpush1.bf16.msra.mxu0 %v503
    %716 = vmatprep.subr.bf16.mxu0 %v508
    %717 = vmatpush1.bf16.msra.mxu0 %v507
    %718 = vmatprep.subr.bf16.mxu0 0
    %719 = vmatpush1.bf16.msra.mxu0 0
    %720 = vmatprep.subr.bf16.mxu0 0
    %721 = vmatpush1.bf16.msra.mxu0 0
    %722 = vmatprep.subr.bf16.mxu0 0
    %723 = vmatpush1.bf16.msra.mxu0 0
    %724 = vmatprep.subr.bf16.mxu0 0
    %725 = vmatpush1.bf16.msra.mxu0 0
    %726 = vmatprep.subr.bf16.mxu0 0
    %727 = vmatpush1.bf16.msra.mxu0 0
    %728 = vmatprep.subr.bf16.mxu0 0
    %729 = vmatpush1.bf16.msra.mxu0 0
    %730 = vmatprep.subr.bf16.mxu0 0
    %731 = vmatpush1.bf16.msra.mxu0 0
    %732 = vmatprep.subr.bf16.mxu0 0
    %733 = vmatpush1.bf16.msra.mxu0 0
    %734 = vmatprep.mubr.bf16.mxu0 0
    %735 = vmatmul.mubr.bf16.gmra.mrb[0].mxu0 %v573
    %v736 = vpop.f32.mrb[0].mxu0
    %v737 = vadd.f32 0.0, %v736
    %v738 = vpop.f32.mrb[0].mxu0
    %v739 = vadd.f32 0.0, %v738
    %v740 = vpop.f32.mrb[0].mxu0
    %v741 = vadd.f32 0.0, %v740
    %v742 = vpop.f32.mrb[0].mxu0
    %v743 = vadd.f32 0.0, %v742
    %744 = vmatprep.mubr.bf16.mxu0 0
    %745 = vmatmul.mubr.bf16.gmra.mrb[0].mxu0 %v574
    %v746 = vpop.f32.mrb[0].mxu0
    %v747 = vadd.f32 0.0, %v746
    %v748 = vpop.f32.mrb[0].mxu0
    %v749 = vadd.f32 0.0, %v748
    %v750 = vpop.f32.mrb[0].mxu0
    %v751 = vadd.f32 0.0, %v750
    %v752 = vpop.f32.mrb[0].mxu0
    %v753 = vadd.f32 0.0, %v752
    %754 = vmatprep.mubr.bf16.mxu0 0
    %755 = vmatmul.mubr.bf16.gmra.mrb[0].mxu0 %v575
    %v756 = vpop.f32.mrb[0].mxu0
    %v757 = vadd.f32 0.0, %v756
    %v758 = vpop.f32.mrb[0].mxu0
    %v759 = vadd.f32 0.0, %v758
    %v760 = vpop.f32.mrb[0].mxu0
    %v761 = vadd.f32 0.0, %v760
    %v762 = vpop.f32.mrb[0].mxu0
    %v763 = vadd.f32 0.0, %v762
    %764 = vmatprep.mubr.bf16.mxu0 0
    %765 = vmatmul.mubr.bf16.gmra.mrb[0].mxu0 %v576
    %v766 = vpop.f32.mrb[0].mxu0
    %v767 = vadd.f32 0.0, %v766
    %v768 = vpop.f32.mrb[0].mxu0
    %v769 = vadd.f32 0.0, %v768
    %v770 = vpop.f32.mrb[0].mxu0
    %v771 = vadd.f32 0.0, %v770
    %v772 = vpop.f32.mrb[0].mxu0
    %v773 = vadd.f32 0.0, %v772
    %774 = vmatprep.mubr.bf16.mxu0 0
    %775 = vmatmul.mubr.bf16.gmra.mrb[0].mxu0 %v577
    %v776 = vpop.f32.mrb[0].mxu0
    %v777 = vadd.f32 0.0, %v776
    %v778 = vpop.f32.mrb[0].mxu0
    %v779 = vadd.f32 0.0, %v778
    %v780 = vpop.f32.mrb[0].mxu0
    %v781 = vadd.f32 0.0, %v780
    %v782 = vpop.f32.mrb[0].mxu0
    %v783 = vadd.f32 0.0, %v782
    %784 = vmatprep.mubr.bf16.mxu0 0
    %785 = vmatmul.mubr.bf16.gmra.mrb[0].mxu0 %v578
    %v786 = vpop.f32.mrb[0].mxu0
    %v787 = vadd.f32 0.0, %v786
    %v788 = vpop.f32.mrb[0].mxu0
    %v789 = vadd.f32 0.0, %v788
    %v790 = vpop.f32.mrb[0].mxu0
    %v791 = vadd.f32 0.0, %v790
    %v792 = vpop.f32.mrb[0].mxu0
    %v793 = vadd.f32 0.0, %v792
    %794 = vmatprep.mubr.bf16.mxu0 0
    %795 = vmatmul.mubr.bf16.gmra.mrb[0].mxu0 %v579
    %v796 = vpop.f32.mrb[0].mxu0
    %v797 = vadd.f32 0.0, %v796
    %v798 = vpop.f32.mrb[0].mxu0
    %v799 = vadd.f32 0.0, %v798
    %v800 = vpop.f32.mrb[0].mxu0
    %v801 = vadd.f32 0.0, %v800
    %v802 = vpop.f32.mrb[0].mxu0
    %v803 = vadd.f32 0.0, %v802
    %804 = vmatprep.mubr.bf16.mxu0 0
    %805 = vmatmul.mubr.bf16.gmra.mrb[0].mxu0 %v580
    %v806 = vpop.f32.mrb[0].mxu0
    %v807 = vadd.f32 0.0, %v806
    %v808 = vpop.f32.mrb[0].mxu0
    %v809 = vadd.f32 0.0, %v808
    %v810 = vpop.f32.mrb[0].mxu0
    %v811 = vadd.f32 0.0, %v810
    %v812 = vpop.f32.mrb[0].mxu0
    %v813 = vadd.f32 0.0, %v812
    %814 = vdwg.mxu0
    %v831 = vunpack.c.l.b16 %v509
    %v832 = vunpack.c.l.b16 %v510
    %v833 = vunpack.c.l.b16 %v511
    %v834 = vunpack.c.l.b16 %v512
    %v835 = vunpack.c.l.b16 %v513
    %v836 = vunpack.c.l.b16 %v514
    %v837 = vunpack.c.l.b16 %v515
    %v838 = vunpack.c.l.b16 %v516
    %v839 = vunpack.c.l.b16 %v517
    %v840 = vunpack.c.l.b16 %v518
    %v841 = vunpack.c.l.b16 %v519
    %v842 = vunpack.c.l.b16 %v520
    %v843 = vunpack.c.l.b16 %v521
    %v844 = vunpack.c.l.b16 %v522
    %v845 = vunpack.c.l.b16 %v523
    %v846 = vunpack.c.l.b16 %v524
    %v847 = vpack.c.b16 %v832, %v831
    %v848 = vpack.c.b16 %v834, %v833
    %v849 = vpack.c.b16 %v836, %v835
    %v850 = vpack.c.b16 %v838, %v837
    %v851 = vpack.c.b16 %v840, %v839
    %v852 = vpack.c.b16 %v842, %v841
    %v853 = vpack.c.b16 %v844, %v843
    %v854 = vpack.c.b16 %v846, %v845
    %863 = vmatprep.subr.bf16.mxu0 %v301
    %864 = vmatpush1.bf16.msra.mxu0 %v300
    %865 = vmatprep.subr.bf16.mxu0 %v305
    %866 = vmatpush1.bf16.msra.mxu0 %v304
    %867 = vmatprep.subr.bf16.mxu0 %v309
    %868 = vmatpush1.bf16.msra.mxu0 %v308
    %869 = vmatprep.subr.bf16.mxu0 %v313
    %870 = vmatpush1.bf16.msra.mxu0 %v312
    %871 = vmatprep.subr.bf16.mxu0 %v317
    %872 = vmatpush1.bf16.msra.mxu0 %v316
    %873 = vmatprep.subr.bf16.mxu0 %v321
    %874 = vmatpush1.bf16.msra.mxu0 %v320
    %875 = vmatprep.subr.bf16.mxu0 %v325
    %876 = vmatpush1.bf16.msra.mxu0 %v324
    %877 = vmatprep.subr.bf16.mxu0 %v329
    %878 = vmatpush1.bf16.msra.mxu0 %v328
    %879 = vmatprep.subr.bf16.mxu0 0
    %880 = vmatpush1.bf16.msra.mxu0 0
    %881 = vmatprep.subr.bf16.mxu0 0
    %882 = vmatpush1.bf16.msra.mxu0 0
    %883 = vmatprep.subr.bf16.mxu0 0
    %884 = vmatpush1.bf16.msra.mxu0 0
    %885 = vmatprep.subr.bf16.mxu0 0
    %886 = vmatpush1.bf16.msra.mxu0 0
    %887 = vmatprep.subr.bf16.mxu0 0
    %888 = vmatpush1.bf16.msra.mxu0 0
    %889 = vmatprep.subr.bf16.mxu0 0
    %890 = vmatpush1.bf16.msra.mxu0 0
    %891 = vmatprep.subr.bf16.mxu0 0
    %892 = vmatpush1.bf16.msra.mxu0 0
    %893 = vmatprep.subr.bf16.mxu0 0
    %894 = vmatpush1.bf16.msra.mxu0 0
    %895 = vmatprep.mubr.bf16.mxu0 0
    %896 = vmatmul.mubr.bf16.gmra.mrb[0].mxu0 %v847
    %v897 = vpop.f32.mrb[0].mxu0
    %v898 = vadd.f32 %v624, %v897
    %v899 = vpop.f32.mrb[0].mxu0
    %v900 = vadd.f32 %v626, %v899
    %v901 = vpop.f32.mrb[0].mxu0
    %v902 = vadd.f32 %v628, %v901
    %v903 = vpop.f32.mrb[0].mxu0
    %v904 = vadd.f32 %v630, %v903
    %905 = vmatprep.mubr.bf16.mxu0 0
    %906 = vmatmul.mubr.bf16.gmra.mrb[0].mxu0 %v848
    %v907 = vpop.f32.mrb[0].mxu0
    %v908 = vadd.f32 %v634, %v907
    %v909 = vpop.f32.mrb[0].mxu0
    %v910 = vadd.f32 %v636, %v909
    %v911 = vpop.f32.mrb[0].mxu0
    %v912 = vadd.f32 %v638, %v911
    %v913 = vpop.f32.mrb[0].mxu0
    %v914 = vadd.f32 %v640, %v913
    %915 = vmatprep.mubr.bf16.mxu0 0
    %916 = vmatmul.mubr.bf16.gmra.mrb[0].mxu0 %v849
    %v917 = vpop.f32.mrb[0].mxu0
    %v918 = vadd.f32 %v644, %v917
    %v919 = vpop.f32.mrb[0].mxu0
    %v920 = vadd.f32 %v646, %v919
    %v921 = vpop.f32.mrb[0].mxu0
    %v922 = vadd.f32 %v648, %v921
    %v923 = vpop.f32.mrb[0].mxu0
    %v924 = vadd.f32 %v650, %v923
    %925 = vmatprep.mubr.bf16.mxu0 0
    %926 = vmatmul.mubr.bf16.gmra.mrb[0].mxu0 %v850
    %v927 = vpop.f32.mrb[0].mxu0
    %v928 = vadd.f32 %v654, %v927
    %v929 = vpop.f32.mrb[0].mxu0
    %v930 = vadd.f32 %v656, %v929
    %v931 = vpop.f32.mrb[0].mxu0
    %v932 = vadd.f32 %v658, %v931
    %v933 = vpop.f32.mrb[0].mxu0
    %v934 = vadd.f32 %v660, %v933
    %935 = vmatprep.mubr.bf16.mxu0 0
    %936 = vmatmul.mubr.bf16.gmra.mrb[0].mxu0 %v851
    %v937 = vpop.f32.mrb[0].mxu0
    %v938 = vadd.f32 %v664, %v937
    %v939 = vpop.f32.mrb[0].mxu0
    %v940 = vadd.f32 %v666, %v939
    %v941 = vpop.f32.mrb[0].mxu0
    %v942 = vadd.f32 %v668, %v941
    %v943 = vpop.f32.mrb[0].mxu0
    %v944 = vadd.f32 %v670, %v943
    %945 = vmatprep.mubr.bf16.mxu0 0
    %946 = vmatmul.mubr.bf16.gmra.mrb[0].mxu0 %v852
    %v947 = vpop.f32.mrb[0].mxu0
    %v948 = vadd.f32 %v674, %v947
    %v949 = vpop.f32.mrb[0].mxu0
    %v950 = vadd.f32 %v676, %v949
    %v951 = vpop.f32.mrb[0].mxu0
    %v952 = vadd.f32 %v678, %v951
    %v953 = vpop.f32.mrb[0].mxu0
    %v954 = vadd.f32 %v680, %v953
    %955 = vmatprep.mubr.bf16.mxu0 0
    %956 = vmatmul.mubr.bf16.gmra.mrb[0].mxu0 %v853
    %v957 = vpop.f32.mrb[0].mxu0
    %v958 = vadd.f32 %v684, %v957
    %v959 = vpop.f32.mrb[0].mxu0
    %v960 = vadd.f32 %v686, %v959
    %v961 = vpop.f32.mrb[0].mxu0
    %v962 = vadd.f32 %v688, %v961
    %v963 = vpop.f32.mrb[0].mxu0
    %v964 = vadd.f32 %v690, %v963
    %965 = vmatprep.mubr.bf16.mxu0 0
    %966 = vmatmul.mubr.bf16.gmra.mrb[0].mxu0 %v854
    %v967 = vpop.f32.mrb[0].mxu0
    %v968 = vadd.f32 %v694, %v967
    %v969 = vpop.f32.mrb[0].mxu0
    %v970 = vadd.f32 %v696, %v969
    %v971 = vpop.f32.mrb[0].mxu0
    %v972 = vadd.f32 %v698, %v971
    %v973 = vpop.f32.mrb[0].mxu0
    %v974 = vadd.f32 %v700, %v973
    %975 = vdwg.mxu0
    %976 = vmatprep.subr.bf16.mxu0 %v303
    %977 = vmatpush1.bf16.msra.mxu0 %v302
    %978 = vmatprep.subr.bf16.mxu0 %v307
    %979 = vmatpush1.bf16.msra.mxu0 %v306
    %980 = vmatprep.subr.bf16.mxu0 %v311
    %981 = vmatpush1.bf16.msra.mxu0 %v310
    %982 = vmatprep.subr.bf16.mxu0 %v315
    %983 = vmatpush1.bf16.msra.mxu0 %v314
    %984 = vmatprep.subr.bf16.mxu0 %v319
    %985 = vmatpush1.bf16.msra.mxu0 %v318
    %986 = vmatprep.subr.bf16.mxu0 %v323
    %987 = vmatpush1.bf16.msra.mxu0 %v322
    %988 = vmatprep.subr.bf16.mxu0 %v327
    %989 = vmatpush1.bf16.msra.mxu0 %v326
    %990 = vmatprep.subr.bf16.mxu0 %v331
    %991 = vmatpush1.bf16.msra.mxu0 %v330
    %992 = vmatprep.subr.bf16.mxu0 0
    %993 = vmatpush1.bf16.msra.mxu0 0
    %994 = vmatprep.subr.bf16.mxu0 0
    %995 = vmatpush1.bf16.msra.mxu0 0
    %996 = vmatprep.subr.bf16.mxu0 0
    %997 = vmatpush1.bf16.msra.mxu0 0
    %998 = vmatprep.subr.bf16.mxu0 0
    %999 = vmatpush1.bf16.msra.mxu0 0
    %1000 = vmatprep.subr.bf16.mxu0 0
    %1001 = vmatpush1.bf16.msra.mxu0 0
    %1002 = vmatprep.subr.bf16.mxu0 0
    %1003 = vmatpush1.bf16.msra.mxu0 0
    %1004 = vmatprep.subr.bf16.mxu0 0
    %1005 = vmatpush1.bf16.msra.mxu0 0
    %1006 = vmatprep.subr.bf16.mxu0 0
    %1007 = vmatpush1.bf16.msra.mxu0 0
    %1008 = vmatprep.mubr.bf16.mxu0 0
    %1009 = vmatmul.mubr.bf16.gmra.mrb[0].mxu0 %v847
    %v1010 = vpop.f32.mrb[0].mxu0
    %v1011 = vadd.f32 %v737, %v1010
    %v1012 = vpop.f32.mrb[0].mxu0
    %v1013 = vadd.f32 %v739, %v1012
    %v1014 = vpop.f32.mrb[0].mxu0
    %v1015 = vadd.f32 %v741, %v1014
    %v1016 = vpop.f32.mrb[0].mxu0
    %v1017 = vadd.f32 %v743, %v1016
    %1018 = vmatprep.mubr.bf16.mxu0 0
    %1019 = vmatmul.mubr.bf16.gmra.mrb[0].mxu0 %v848
    %v1020 = vpop.f32.mrb[0].mxu0
    %v1021 = vadd.f32 %v747, %v1020
    %v1022 = vpop.f32.mrb[0].mxu0
    %v1023 = vadd.f32 %v749, %v1022
    %v1024 = vpop.f32.mrb[0].mxu0
    %v1025 = vadd.f32 %v751, %v1024
    %v1026 = vpop.f32.mrb[0].mxu0
    %v1027 = vadd.f32 %v753, %v1026
    %1028 = vmatprep.mubr.bf16.mxu0 0
    %1029 = vmatmul.mubr.bf16.gmra.mrb[0].mxu0 %v849
    %v1030 = vpop.f32.mrb[0].mxu0
    %v1031 = vadd.f32 %v757, %v1030
    %v1032 = vpop.f32.mrb[0].mxu0
    %v1033 = vadd.f32 %v759, %v1032
    %v1034 = vpop.f32.mrb[0].mxu0
    %v1035 = vadd.f32 %v761, %v1034
    %v1036 = vpop.f32.mrb[0].mxu0
    %v1037 = vadd.f32 %v763, %v1036
    %1038 = vmatprep.mubr.bf16.mxu0 0
    %1039 = vmatmul.mubr.bf16.gmra.mrb[0].mxu0 %v850
    %v1040 = vpop.f32.mrb[0].mxu0
    %v1041 = vadd.f32 %v767, %v1040
    %v1042 = vpop.f32.mrb[0].mxu0
    %v1043 = vadd.f32 %v769, %v1042
    %v1044 = vpop.f32.mrb[0].mxu0
    %v1045 = vadd.f32 %v771, %v1044
    %v1046 = vpop.f32.mrb[0].mxu0
    %v1047 = vadd.f32 %v773, %v1046
    %1048 = vmatprep.mubr.bf16.mxu0 0
    %1049 = vmatmul.mubr.bf16.gmra.mrb[0].mxu0 %v851
    %v1050 = vpop.f32.mrb[0].mxu0
    %v1051 = vadd.f32 %v777, %v1050
    %v1052 = vpop.f32.mrb[0].mxu0
    %v1053 = vadd.f32 %v779, %v1052
    %v1054 = vpop.f32.mrb[0].mxu0
    %v1055 = vadd.f32 %v781, %v1054
    %v1056 = vpop.f32.mrb[0].mxu0
    %v1057 = vadd.f32 %v783, %v1056
    %1058 = vmatprep.mubr.bf16.mxu0 0
    %1059 = vmatmul.mubr.bf16.gmra.mrb[0].mxu0 %v852
    %v1060 = vpop.f32.mrb[0].mxu0
    %v1061 = vadd.f32 %v787, %v1060
    %v1062 = vpop.f32.mrb[0].mxu0
    %v1063 = vadd.f32 %v789, %v1062
    %v1064 = vpop.f32.mrb[0].mxu0
    %v1065 = vadd.f32 %v791, %v1064
    %v1066 = vpop.f32.mrb[0].mxu0
    %v1067 = vadd.f32 %v793, %v1066
    %1068 = vmatprep.mubr.bf16.mxu0 0
    %1069 = vmatmul.mubr.bf16.gmra.mrb[0].mxu0 %v853
    %v1070 = vpop.f32.mrb[0].mxu0
    %v1071 = vadd.f32 %v797, %v1070
    %v1072 = vpop.f32.mrb[0].mxu0
    %v1073 = vadd.f32 %v799, %v1072
    %v1074 = vpop.f32.mrb[0].mxu0
    %v1075 = vadd.f32 %v801, %v1074
    %v1076 = vpop.f32.mrb[0].mxu0
    %v1077 = vadd.f32 %v803, %v1076
    %1078 = vmatprep.mubr.bf16.mxu0 0
    %1079 = vmatmul.mubr.bf16.gmra.mrb[0].mxu0 %v854
    %v1080 = vpop.f32.mrb[0].mxu0
    %v1081 = vadd.f32 %v807, %v1080
    %v1082 = vpop.f32.mrb[0].mxu0
    %v1083 = vadd.f32 %v809, %v1082
    %v1084 = vpop.f32.mrb[0].mxu0
    %v1085 = vadd.f32 %v811, %v1084
    %v1086 = vpop.f32.mrb[0].mxu0
    %v1087 = vadd.f32 %v813, %v1086
    %1088 = vdwg.mxu0
    %v1089 = vld [vmem:[#allocation11] sm:$0xff]
    %v1090 = vld [vmem:[#allocation11 + $0x8] sm:$0xff]
    %v1091 = vld [vmem:[#allocation11 + $0x10] sm:$0xff]
    %v1092 = vld [vmem:[#allocation11 + $0x18] sm:$0xff]
    %v1093 = vld [vmem:[#allocation11 + $0x20] sm:$0xff]
    %v1094 = vld [vmem:[#allocation11 + $0x28] sm:$0xff]
    %v1095 = vld [vmem:[#allocation11 + $0x30] sm:$0xff]
    %v1096 = vld [vmem:[#allocation11 + $0x38] sm:$0xff]
    %v1097 = vld [vmem:[#allocation11 + $0x40] sm:$0xff]
    %v1098 = vld [vmem:[#allocation11 + $0x48] sm:$0xff]
    %v1099 = vld [vmem:[#allocation11 + $0x50] sm:$0xff]
    %v1100 = vld [vmem:[#allocation11 + $0x58] sm:$0xff]
    %v1101 = vld [vmem:[#allocation11 + $0x60] sm:$0xff]
    %v1102 = vld [vmem:[#allocation11 + $0x68] sm:$0xff]
    %v1103 = vld [vmem:[#allocation11 + $0x70] sm:$0xff]
    %v1104 = vld [vmem:[#allocation11 + $0x78] sm:$0xff]
    %s1105 = sld [smem:[#allocation2]]
    %1107 = vset.pattern.permute.xlu0 0
    %1108 = vperm.xlu0 %1107, %v1089
    %v1109 = vpop.permute.xlu0 %1108
    %1112 = vset.pattern.permute.xlu0 0
    %1113 = vperm.xlu0 %1112, %v1090
    %v1114 = vpop.permute.xlu0 %1113
    %1117 = vset.pattern.permute.xlu0 0
    %1118 = vperm.xlu0 %1117, %v1091
    %v1119 = vpop.permute.xlu0 %1118
    %1122 = vset.pattern.permute.xlu0 0
    %1123 = vperm.xlu0 %1122, %v1092
    %v1124 = vpop.permute.xlu0 %1123
    %1127 = vset.pattern.permute.xlu0 0
    %1128 = vperm.xlu0 %1127, %v1093
    %v1129 = vpop.permute.xlu0 %1128
    %1132 = vset.pattern.permute.xlu0 0
    %1133 = vperm.xlu0 %1132, %v1094
    %v1134 = vpop.permute.xlu0 %1133
    %1137 = vset.pattern.permute.xlu0 0
    %1138 = vperm.xlu0 %1137, %v1095
    %v1139 = vpop.permute.xlu0 %1138
    %1142 = vset.pattern.permute.xlu0 0
    %1143 = vperm.xlu0 %1142, %v1096
    %v1144 = vpop.permute.xlu0 %1143
    %1147 = vset.pattern.permute.xlu0 0
    %1148 = vperm.xlu0 %1147, %v1097
    %v1149 = vpop.permute.xlu0 %1148
    %1152 = vset.pattern.permute.xlu0 0
    %1153 = vperm.xlu0 %1152, %v1098
    %v1154 = vpop.permute.xlu0 %1153
    %1157 = vset.pattern.permute.xlu0 0
    %1158 = vperm.xlu0 %1157, %v1099
    %v1159 = vpop.permute.xlu0 %1158
    %1162 = vset.pattern.permute.xlu0 0
    %1163 = vperm.xlu0 %1162, %v1100
    %v1164 = vpop.permute.xlu0 %1163
    %1167 = vset.pattern.permute.xlu0 0
    %1168 = vperm.xlu0 %1167, %v1101
    %v1169 = vpop.permute.xlu0 %1168
    %1172 = vset.pattern.permute.xlu0 0
    %1173 = vperm.xlu0 %1172, %v1102
    %v1174 = vpop.permute.xlu0 %1173
    %1177 = vset.pattern.permute.xlu0 0
    %1178 = vperm.xlu0 %1177, %v1103
    %v1179 = vpop.permute.xlu0 %1178
    %1182 = vset.pattern.permute.xlu0 0
    %1183 = vperm.xlu0 %1182, %v1104
    %v1184 = vpop.permute.xlu0 %1183
    %v1186 = vadd.f32 %v898, %v1109
    %v1187 = vadd.f32 %v900, %v1109
    %v1188 = vadd.f32 %v1011, %v1109
    %v1189 = vadd.f32 %v1013, %v1109
    %v1190 = vadd.f32 %v902, %v1114
    %v1191 = vadd.f32 %v904, %v1114
    %v1192 = vadd.f32 %v1015, %v1114
    %v1193 = vadd.f32 %v1017, %v1114
    %v1194 = vadd.f32 %v908, %v1119
    %v1195 = vadd.f32 %v910, %v1119
    %v1196 = vadd.f32 %v1021, %v1119
    %v1197 = vadd.f32 %v1023, %v1119
    %v1198 = vadd.f32 %v912, %v1124
    %v1199 = vadd.f32 %v914, %v1124
    %v1200 = vadd.f32 %v1025, %v1124
    %v1201 = vadd.f32 %v1027, %v1124
    %v1202 = vadd.f32 %v918, %v1129
    %v1203 = vadd.f32 %v920, %v1129
    %v1204 = vadd.f32 %v1031, %v1129
    %v1205 = vadd.f32 %v1033, %v1129
    %v1206 = vadd.f32 %v922, %v1134
    %v1207 = vadd.f32 %v924, %v1134
    %v1208 = vadd.f32 %v1035, %v1134
    %v1209 = vadd.f32 %v1037, %v1134
    %v1210 = vadd.f32 %v928, %v1139
    %v1211 = vadd.f32 %v930, %v1139
    %v1212 = vadd.f32 %v1041, %v1139
    %v1213 = vadd.f32 %v1043, %v1139
    %v1214 = vadd.f32 %v932, %v1144
    %v1215 = vadd.f32 %v934, %v1144
    %v1216 = vadd.f32 %v1045, %v1144
    %v1217 = vadd.f32 %v1047, %v1144
    %v1218 = vadd.f32 %v938, %v1149
    %v1219 = vadd.f32 %v940, %v1149
    %v1220 = vadd.f32 %v1051, %v1149
    %v1221 = vadd.f32 %v1053, %v1149
    %v1222 = vadd.f32 %v942, %v1154
    %v1223 = vadd.f32 %v944, %v1154
    %v1224 = vadd.f32 %v1055, %v1154
    %v1225 = vadd.f32 %v1057, %v1154
    %v1226 = vadd.f32 %v948, %v1159
    %v1227 = vadd.f32 %v950, %v1159
    %v1228 = vadd.f32 %v1061, %v1159
    %v1229 = vadd.f32 %v1063, %v1159
    %v1230 = vadd.f32 %v952, %v1164
    %v1231 = vadd.f32 %v954, %v1164
    %v1232 = vadd.f32 %v1065, %v1164
    %v1233 = vadd.f32 %v1067, %v1164
    %v1234 = vadd.f32 %v958, %v1169
    %v1235 = vadd.f32 %v960, %v1169
    %v1236 = vadd.f32 %v1071, %v1169
    %v1237 = vadd.f32 %v1073, %v1169
    %v1238 = vadd.f32 %v962, %v1174
    %v1239 = vadd.f32 %v964, %v1174
    %v1240 = vadd.f32 %v1075, %v1174
    %v1241 = vadd.f32 %v1077, %v1174
    %v1242 = vadd.f32 %v968, %v1179
    %v1243 = vadd.f32 %v970, %v1179
    %v1244 = vadd.f32 %v1081, %v1179
    %v1245 = vadd.f32 %v1083, %v1179
    %v1246 = vadd.f32 %v972, %v1184
    %v1247 = vadd.f32 %v974, %v1184
    %v1248 = vadd.f32 %v1085, %v1184
    %v1249 = vadd.f32 %v1087, %v1184
    %v1250 = vmax.f32 %v1186, 0.0
    %v1251 = vmax.f32 %v1187, 0.0
    %v1252 = vmax.f32 %v1188, 0.0
    %v1253 = vmax.f32 %v1189, 0.0
    %v1254 = vmax.f32 %v1190, 0.0
    %v1255 = vmax.f32 %v1191, 0.0
    %v1256 = vmax.f32 %v1192, 0.0
    %v1257 = vmax.f32 %v1193, 0.0
    %v1258 = vmax.f32 %v1194, 0.0
    %v1259 = vmax.f32 %v1195, 0.0
    %v1260 = vmax.f32 %v1196, 0.0
    %v1261 = vmax.f32 %v1197, 0.0
    %v1262 = vmax.f32 %v1198, 0.0
    %v1263 = vmax.f32 %v1199, 0.0
    %v1264 = vmax.f32 %v1200, 0.0
    %v1265 = vmax.f32 %v1201, 0.0
    %v1266 = vmax.f32 %v1202, 0.0
    %v1267 = vmax.f32 %v1203, 0.0
    %v1268 = vmax.f32 %v1204, 0.0
    %v1269 = vmax.f32 %v1205, 0.0
    %v1270 = vmax.f32 %v1206, 0.0
    %v1271 = vmax.f32 %v1207, 0.0
    %v1272 = vmax.f32 %v1208, 0.0
    %v1273 = vmax.f32 %v1209, 0.0
    %v1274 = vmax.f32 %v1210, 0.0
    %v1275 = vmax.f32 %v1211, 0.0
    %v1276 = vmax.f32 %v1212, 0.0
    %v1277 = vmax.f32 %v1213, 0.0
    %v1278 = vmax.f32 %v1214, 0.0
    %v1279 = vmax.f32 %v1215, 0.0
    %v1280 = vmax.f32 %v1216, 0.0
    %v1281 = vmax.f32 %v1217, 0.0
    %v1282 = vmax.f32 %v1218, 0.0
    %v1283 = vmax.f32 %v1219, 0.0
    %v1284 = vmax.f32 %v1220, 0.0
    %v1285 = vmax.f32 %v1221, 0.0
    %v1286 = vmax.f32 %v1222, 0.0
    %v1287 = vmax.f32 %v1223, 0.0
    %v1288 = vmax.f32 %v1224, 0.0
    %v1289 = vmax.f32 %v1225, 0.0
    %v1290 = vmax.f32 %v1226, 0.0
    %v1291 = vmax.f32 %v1227, 0.0
    %v1292 = vmax.f32 %v1228, 0.0
    %v1293 = vmax.f32 %v1229, 0.0
    %v1294 = vmax.f32 %v1230, 0.0
    %v1295 = vmax.f32 %v1231, 0.0
    %v1296 = vmax.f32 %v1232, 0.0
    %v1297 = vmax.f32 %v1233, 0.0
    %v1298 = vmax.f32 %v1234, 0.0
    %v1299 = vmax.f32 %v1235, 0.0
    %v1300 = vmax.f32 %v1236, 0.0
    %v1301 = vmax.f32 %v1237, 0.0
    %v1302 = vmax.f32 %v1238, 0.0
    %v1303 = vmax.f32 %v1239, 0.0
    %v1304 = vmax.f32 %v1240, 0.0
    %v1305 = vmax.f32 %v1241, 0.0
    %v1306 = vmax.f32 %v1242, 0.0
    %v1307 = vmax.f32 %v1243, 0.0
    %v1308 = vmax.f32 %v1244, 0.0
    %v1309 = vmax.f32 %v1245, 0.0
    %v1310 = vmax.f32 %v1246, 0.0
    %v1311 = vmax.f32 %v1247, 0.0
    %v1312 = vmax.f32 %v1248, 0.0
    %v1313 = vmax.f32 %v1249, 0.0
    %v1314 = vld [vmem:[#allocation12] sm:$0xf]
    %v1315 = vld [vmem:[#allocation12 + $0x4] sm:$0xf]
    %v1316 = vld [vmem:[#allocation12 + $0x8] sm:$0xf]
    %v1317 = vld [vmem:[#allocation12 + $0xc] sm:$0xf]
    %v1318 = vld [vmem:[#allocation12 + $0x10] sm:$0xf]
    %v1319 = vld [vmem:[#allocation12 + $0x14] sm:$0xf]
    %v1320 = vld [vmem:[#allocation12 + $0x18] sm:$0xf]
    %v1321 = vld [vmem:[#allocation12 + $0x1c] sm:$0xf]
    %v1322 = vld [vmem:[#allocation12 + $0x20] sm:$0xf]
    %v1323 = vld [vmem:[#allocation12 + $0x24] sm:$0xf]
    %v1324 = vld [vmem:[#allocation12 + $0x28] sm:$0xf]
    %v1325 = vld [vmem:[#allocation12 + $0x2c] sm:$0xf]
    %v1326 = vld [vmem:[#allocation12 + $0x30] sm:$0xf]
    %v1327 = vld [vmem:[#allocation12 + $0x34] sm:$0xf]
    %v1328 = vld [vmem:[#allocation12 + $0x38] sm:$0xf]
    %v1329 = vld [vmem:[#allocation12 + $0x3c] sm:$0xf]
    %v1330 = vpack.c.bf16 %v1254, %v1250
    %v1331 = vpack.c.bf16 %v1255, %v1251
    %v1332 = vpack.c.bf16 %v1256, %v1252
    %v1333 = vpack.c.bf16 %v1257, %v1253
    %v1334 = vpack.c.bf16 %v1262, %v1258
    %v1335 = vpack.c.bf16 %v1263, %v1259
    %v1336 = vpack.c.bf16 %v1264, %v1260
    %v1337 = vpack.c.bf16 %v1265, %v1261
    %v1338 = vpack.c.bf16 %v1270, %v1266
    %v1339 = vpack.c.bf16 %v1271, %v1267
    %v1340 = vpack.c.bf16 %v1272, %v1268
    %v1341 = vpack.c.bf16 %v1273, %v1269
    %v1342 = vpack.c.bf16 %v1278, %v1274
    %v1343 = vpack.c.bf16 %v1279, %v1275
    %v1344 = vpack.c.bf16 %v1280, %v1276
    %v1345 = vpack.c.bf16 %v1281, %v1277
    %v1346 = vpack.c.bf16 %v1286, %v1282
    %v1347 = vpack.c.bf16 %v1287, %v1283
    %v1348 = vpack.c.bf16 %v1288, %v1284
    %v1349 = vpack.c.bf16 %v1289, %v1285
    %v1350 = vpack.c.bf16 %v1294, %v1290
    %v1351 = vpack.c.bf16 %v1295, %v1291
    %v1352 = vpack.c.bf16 %v1296, %v1292
    %v1353 = vpack.c.bf16 %v1297, %v1293
    %v1354 = vpack.c.bf16 %v1302, %v1298
    %v1355 = vpack.c.bf16 %v1303, %v1299
    %v1356 = vpack.c.bf16 %v1304, %v1300
    %v1357 = vpack.c.bf16 %v1305, %v1301
    %v1358 = vpack.c.bf16 %v1310, %v1306
    %v1359 = vpack.c.bf16 %v1311, %v1307
    %v1360 = vpack.c.bf16 %v1312, %v1308
    %v1361 = vpack.c.bf16 %v1313, %v1309
    %v1362 = vld [vmem:[#allocation14] sm:$0xff]
    %v1363 = vld [vmem:[#allocation14 + $0x8] sm:$0xff]
    %v1364 = vld [vmem:[#allocation14 + $0x10] sm:$0xff]
    %v1365 = vld [vmem:[#allocation14 + $0x18] sm:$0xff]
    %v1366 = vld [vmem:[#allocation14 + $0x20] sm:$0xff]
    %v1367 = vld [vmem:[#allocation14 + $0x28] sm:$0xff]
    %v1368 = vld [vmem:[#allocation14 + $0x30] sm:$0xff]
    %v1369 = vld [vmem:[#allocation14 + $0x38] sm:$0xff]
    %v1370 = vld [vmem:[#allocation14 + $0x40] sm:$0xff]
    %v1371 = vld [vmem:[#allocation14 + $0x48] sm:$0xff]
    %v1372 = vld [vmem:[#allocation14 + $0x50] sm:$0xff]
    %v1373 = vld [vmem:[#allocation14 + $0x58] sm:$0xff]
    %v1374 = vld [vmem:[#allocation14 + $0x60] sm:$0xff]
    %v1375 = vld [vmem:[#allocation14 + $0x68] sm:$0xff]
    %v1376 = vld [vmem:[#allocation14 + $0x70] sm:$0xff]
    %v1377 = vld [vmem:[#allocation14 + $0x78] sm:$0xff]
    %1379 = vset.pattern.permute.xlu0 0
    %1380 = vperm.xlu0 %1379, %v1362
    %v1381 = vpop.permute.xlu0 %1380
    %1384 = vset.pattern.permute.xlu0 0
    %1385 = vperm.xlu0 %1384, %v1363
    %v1386 = vpop.permute.xlu0 %1385
    %1389 = vset.pattern.permute.xlu0 0
    %1390 = vperm.xlu0 %1389, %v1364
    %v1391 = vpop.permute.xlu0 %1390
    %1394 = vset.pattern.permute.xlu0 0
    %1395 = vperm.xlu0 %1394, %v1365
    %v1396 = vpop.permute.xlu0 %1395
    %1399 = vset.pattern.permute.xlu0 0
    %1400 = vperm.xlu0 %1399, %v1366
    %v1401 = vpop.permute.xlu0 %1400
    %1404 = vset.pattern.permute.xlu0 0
    %1405 = vperm.xlu0 %1404, %v1367
    %v1406 = vpop.permute.xlu0 %1405
    %1409 = vset.pattern.permute.xlu0 0
    %1410 = vperm.xlu0 %1409, %v1368
    %v1411 = vpop.permute.xlu0 %1410
    %1414 = vset.pattern.permute.xlu0 0
    %1415 = vperm.xlu0 %1414, %v1369
    %v1416 = vpop.permute.xlu0 %1415
    %1419 = vset.pattern.permute.xlu0 0
    %1420 = vperm.xlu0 %1419, %v1370
    %v1421 = vpop.permute.xlu0 %1420
    %1424 = vset.pattern.permute.xlu0 0
    %1425 = vperm.xlu0 %1424, %v1371
    %v1426 = vpop.permute.xlu0 %1425
    %1429 = vset.pattern.permute.xlu0 0
    %1430 = vperm.xlu0 %1429, %v1372
    %v1431 = vpop.permute.xlu0 %1430
    %1434 = vset.pattern.permute.xlu0 0
    %1435 = vperm.xlu0 %1434, %v1373
    %v1436 = vpop.permute.xlu0 %1435
    %1439 = vset.pattern.permute.xlu0 0
    %1440 = vperm.xlu0 %1439, %v1374
    %v1441 = vpop.permute.xlu0 %1440
    %1444 = vset.pattern.permute.xlu0 0
    %1445 = vperm.xlu0 %1444, %v1375
    %v1446 = vpop.permute.xlu0 %1445
    %1449 = vset.pattern.permute.xlu0 0
    %1450 = vperm.xlu0 %1449, %v1376
    %v1451 = vpop.permute.xlu0 %1450
    %1454 = vset.pattern.permute.xlu0 0
    %1455 = vperm.xlu0 %1454, %v1377
    %v1456 = vpop.permute.xlu0 %1455
    %v1474 = vunpack.c.l.b16 %v1314
    %v1475 = vunpack.c.l.b16 %v1315
    %v1476 = vunpack.c.l.b16 %v1316
    %v1477 = vunpack.c.l.b16 %v1317
    %v1478 = vunpack.c.l.b16 %v1318
    %v1479 = vunpack.c.l.b16 %v1319
    %v1480 = vunpack.c.l.b16 %v1320
    %v1481 = vunpack.c.l.b16 %v1321
    %v1482 = vunpack.c.l.b16 %v1322
    %v1483 = vunpack.c.l.b16 %v1323
    %v1484 = vunpack.c.l.b16 %v1324
    %v1485 = vunpack.c.l.b16 %v1325
    %v1486 = vunpack.c.l.b16 %v1326
    %v1487 = vunpack.c.l.b16 %v1327
    %v1488 = vunpack.c.l.b16 %v1328
    %v1489 = vunpack.c.l.b16 %v1329
    %v1490 = vpack.c.b16 %v1475, %v1474
    %v1491 = vpack.c.b16 %v1477, %v1476
    %v1492 = vpack.c.b16 %v1479, %v1478
    %v1493 = vpack.c.b16 %v1481, %v1480
    %v1494 = vpack.c.b16 %v1483, %v1482
    %v1495 = vpack.c.b16 %v1485, %v1484
    %v1496 = vpack.c.b16 %v1487, %v1486
    %v1497 = vpack.c.b16 %v1489, %v1488
    %1506 = vmatprep.subr.bf16.mxu0 %v1331
    %1507 = vmatpush1.bf16.msra.mxu0 %v1330
    %1508 = vmatprep.subr.bf16.mxu0 %v1335
    %1509 = vmatpush1.bf16.msra.mxu0 %v1334
    %1510 = vmatprep.subr.bf16.mxu0 %v1339
    %1511 = vmatpush1.bf16.msra.mxu0 %v1338
    %1512 = vmatprep.subr.bf16.mxu0 %v1343
    %1513 = vmatpush1.bf16.msra.mxu0 %v1342
    %1514 = vmatprep.subr.bf16.mxu0 %v1347
    %1515 = vmatpush1.bf16.msra.mxu0 %v1346
    %1516 = vmatprep.subr.bf16.mxu0 %v1351
    %1517 = vmatpush1.bf16.msra.mxu0 %v1350
    %1518 = vmatprep.subr.bf16.mxu0 %v1355
    %1519 = vmatpush1.bf16.msra.mxu0 %v1354
    %1520 = vmatprep.subr.bf16.mxu0 %v1359
    %1521 = vmatpush1.bf16.msra.mxu0 %v1358
    %1522 = vmatprep.subr.bf16.mxu0 0
    %1523 = vmatpush1.bf16.msra.mxu0 0
    %1524 = vmatprep.subr.bf16.mxu0 0
    %1525 = vmatpush1.bf16.msra.mxu0 0
    %1526 = vmatprep.subr.bf16.mxu0 0
    %1527 = vmatpush1.bf16.msra.mxu0 0
    %1528 = vmatprep.subr.bf16.mxu0 0
    %1529 = vmatpush1.bf16.msra.mxu0 0
    %1530 = vmatprep.subr.bf16.mxu0 0
    %1531 = vmatpush1.bf16.msra.mxu0 0
    %1532 = vmatprep.subr.bf16.mxu0 0
    %1533 = vmatpush1.bf16.msra.mxu0 0
    %1534 = vmatprep.subr.bf16.mxu0 0
    %1535 = vmatpush1.bf16.msra.mxu0 0
    %1536 = vmatprep.subr.bf16.mxu0 0
    %1537 = vmatpush1.bf16.msra.mxu0 0
    %1538 = vmatprep.mubr.bf16.mxu0 0
    %1539 = vmatmul.mubr.bf16.gmra.mrb[0].mxu0 %v1490
    %v1540 = vpop.f32.mrb[0].mxu0
    %v1541 = vadd.f32 %v1381, %v1540
    %v1542 = vpop.f32.mrb[0].mxu0
    %v1543 = vadd.f32 %v1381, %v1542
    %v1544 = vpop.f32.mrb[0].mxu0
    %v1545 = vadd.f32 %v1386, %v1544
    %v1546 = vpop.f32.mrb[0].mxu0
    %v1547 = vadd.f32 %v1386, %v1546
    %1548 = vmatprep.mubr.bf16.mxu0 0
    %1549 = vmatmul.mubr.bf16.gmra.mrb[0].mxu0 %v1491
    %v1550 = vpop.f32.mrb[0].mxu0
    %v1551 = vadd.f32 %v1391, %v1550
    %v1552 = vpop.f32.mrb[0].mxu0
    %v1553 = vadd.f32 %v1391, %v1552
    %v1554 = vpop.f32.mrb[0].mxu0
    %v1555 = vadd.f32 %v1396, %v1554
    %v1556 = vpop.f32.mrb[0].mxu0
    %v1557 = vadd.f32 %v1396, %v1556
    %1558 = vmatprep.mubr.bf16.mxu0 0
    %1559 = vmatmul.mubr.bf16.gmra.mrb[0].mxu0 %v1492
    %v1560 = vpop.f32.mrb[0].mxu0
    %v1561 = vadd.f32 %v1401, %v1560
    %v1562 = vpop.f32.mrb[0].mxu0
    %v1563 = vadd.f32 %v1401, %v1562
    %v1564 = vpop.f32.mrb[0].mxu0
    %v1565 = vadd.f32 %v1406, %v1564
    %v1566 = vpop.f32.mrb[0].mxu0
    %v1567 = vadd.f32 %v1406, %v1566
    %1568 = vmatprep.mubr.bf16.mxu0 0
    %1569 = vmatmul.mubr.bf16.gmra.mrb[0].mxu0 %v1493
    %v1570 = vpop.f32.mrb[0].mxu0
    %v1571 = vadd.f32 %v1411, %v1570
    %v1572 = vpop.f32.mrb[0].mxu0
    %v1573 = vadd.f32 %v1411, %v1572
    %v1574 = vpop.f32.mrb[0].mxu0
    %v1575 = vadd.f32 %v1416, %v1574
    %v1576 = vpop.f32.mrb[0].mxu0
    %v1577 = vadd.f32 %v1416, %v1576
    %1578 = vmatprep.mubr.bf16.mxu0 0
    %1579 = vmatmul.mubr.bf16.gmra.mrb[0].mxu0 %v1494
    %v1580 = vpop.f32.mrb[0].mxu0
    %v1581 = vadd.f32 %v1421, %v1580
    %v1582 = vpop.f32.mrb[0].mxu0
    %v1583 = vadd.f32 %v1421, %v1582
    %v1584 = vpop.f32.mrb[0].mxu0
    %v1585 = vadd.f32 %v1426, %v1584
    %v1586 = vpop.f32.mrb[0].mxu0
    %v1587 = vadd.f32 %v1426, %v1586
    %1588 = vmatprep.mubr.bf16.mxu0 0
    %1589 = vmatmul.mubr.bf16.gmra.mrb[0].mxu0 %v1495
    %v1590 = vpop.f32.mrb[0].mxu0
    %v1591 = vadd.f32 %v1431, %v1590
    %v1592 = vpop.f32.mrb[0].mxu0
    %v1593 = vadd.f32 %v1431, %v1592
    %v1594 = vpop.f32.mrb[0].mxu0
    %v1595 = vadd.f32 %v1436, %v1594
    %v1596 = vpop.f32.mrb[0].mxu0
    %v1597 = vadd.f32 %v1436, %v1596
    %1598 = vmatprep.mubr.bf16.mxu0 0
    %1599 = vmatmul.mubr.bf16.gmra.mrb[0].mxu0 %v1496
    %v1600 = vpop.f32.mrb[0].mxu0
    %v1601 = vadd.f32 %v1441, %v1600
    %v1602 = vpop.f32.mrb[0].mxu0
    %v1603 = vadd.f32 %v1441, %v1602
    %v1604 = vpop.f32.mrb[0].mxu0
    %v1605 = vadd.f32 %v1446, %v1604
    %v1606 = vpop.f32.mrb[0].mxu0
    %v1607 = vadd.f32 %v1446, %v1606
    %1608 = vmatprep.mubr.bf16.mxu0 0
    %1609 = vmatmul.mubr.bf16.gmra.mrb[0].mxu0 %v1497
    %v1610 = vpop.f32.mrb[0].mxu0
    %v1611 = vadd.f32 %v1451, %v1610
    %v1612 = vpop.f32.mrb[0].mxu0
    %v1613 = vadd.f32 %v1451, %v1612
    %v1614 = vpop.f32.mrb[0].mxu0
    %v1615 = vadd.f32 %v1456, %v1614
    %v1616 = vpop.f32.mrb[0].mxu0
    %v1617 = vadd.f32 %v1456, %v1616
    %1618 = vdwg.mxu0
    %1619 = vmatprep.subr.bf16.mxu0 %v1333
    %1620 = vmatpush1.bf16.msra.mxu0 %v1332
    %1621 = vmatprep.subr.bf16.mxu0 %v1337
    %1622 = vmatpush1.bf16.msra.mxu0 %v1336
    %1623 = vmatprep.subr.bf16.mxu0 %v1341
    %1624 = vmatpush1.bf16.msra.mxu0 %v1340
    %1625 = vmatprep.subr.bf16.mxu0 %v1345
    %1626 = vmatpush1.bf16.msra.mxu0 %v1344
    %1627 = vmatprep.subr.bf16.mxu0 %v1349
    %1628 = vmatpush1.bf16.msra.mxu0 %v1348
    %1629 = vmatprep.subr.bf16.mxu0 %v1353
    %1630 = vmatpush1.bf16.msra.mxu0 %v1352
    %1631 = vmatprep.subr.bf16.mxu0 %v1357
    %1632 = vmatpush1.bf16.msra.mxu0 %v1356
    %1633 = vmatprep.subr.bf16.mxu0 %v1361
    %1634 = vmatpush1.bf16.msra.mxu0 %v1360
    %1635 = vmatprep.subr.bf16.mxu0 0
    %1636 = vmatpush1.bf16.msra.mxu0 0
    %1637 = vmatprep.subr.bf16.mxu0 0
    %1638 = vmatpush1.bf16.msra.mxu0 0
    %1639 = vmatprep.subr.bf16.mxu0 0
    %1640 = vmatpush1.bf16.msra.mxu0 0
    %1641 = vmatprep.subr.bf16.mxu0 0
    %1642 = vmatpush1.bf16.msra.mxu0 0
    %1643 = vmatprep.subr.bf16.mxu0 0
    %1644 = vmatpush1.bf16.msra.mxu0 0
    %1645 = vmatprep.subr.bf16.mxu0 0
    %1646 = vmatpush1.bf16.msra.mxu0 0
    %1647 = vmatprep.subr.bf16.mxu0 0
    %1648 = vmatpush1.bf16.msra.mxu0 0
    %1649 = vmatprep.subr.bf16.mxu0 0
    %1650 = vmatpush1.bf16.msra.mxu0 0
    %1651 = vmatprep.mubr.bf16.mxu0 0
    %1652 = vmatmul.mubr.bf16.gmra.mrb[0].mxu0 %v1490
    %v1653 = vpop.f32.mrb[0].mxu0
    %v1654 = vadd.f32 %v1381, %v1653
    %v1655 = vpop.f32.mrb[0].mxu0
    %v1656 = vadd.f32 %v1381, %v1655
    %v1657 = vpop.f32.mrb[0].mxu0
    %v1658 = vadd.f32 %v1386, %v1657
    %v1659 = vpop.f32.mrb[0].mxu0
    %v1660 = vadd.f32 %v1386, %v1659
    %1661 = vmatprep.mubr.bf16.mxu0 0
    %1662 = vmatmul.mubr.bf16.gmra.mrb[0].mxu0 %v1491
    %v1663 = vpop.f32.mrb[0].mxu0
    %v1664 = vadd.f32 %v1391, %v1663
    %v1665 = vpop.f32.mrb[0].mxu0
    %v1666 = vadd.f32 %v1391, %v1665
    %v1667 = vpop.f32.mrb[0].mxu0
    %v1668 = vadd.f32 %v1396, %v1667
    %v1669 = vpop.f32.mrb[0].mxu0
    %v1670 = vadd.f32 %v1396, %v1669
    %1671 = vmatprep.mubr.bf16.mxu0 0
    %1672 = vmatmul.mubr.bf16.gmra.mrb[0].mxu0 %v1492
    %v1673 = vpop.f32.mrb[0].mxu0
    %v1674 = vadd.f32 %v1401, %v1673
    %v1675 = vpop.f32.mrb[0].mxu0
    %v1676 = vadd.f32 %v1401, %v1675
    %v1677 = vpop.f32.mrb[0].mxu0
    %v1678 = vadd.f32 %v1406, %v1677
    %v1679 = vpop.f32.mrb[0].mxu0
    %v1680 = vadd.f32 %v1406, %v1679
    %1681 = vmatprep.mubr.bf16.mxu0 0
    %1682 = vmatmul.mubr.bf16.gmra.mrb[0].mxu0 %v1493
    %v1683 = vpop.f32.mrb[0].mxu0
    %v1684 = vadd.f32 %v1411, %v1683
    %v1685 = vpop.f32.mrb[0].mxu0
    %v1686 = vadd.f32 %v1411, %v1685
    %v1687 = vpop.f32.mrb[0].mxu0
    %v1688 = vadd.f32 %v1416, %v1687
    %v1689 = vpop.f32.mrb[0].mxu0
    %v1690 = vadd.f32 %v1416, %v1689
    %1691 = vmatprep.mubr.bf16.mxu0 0
    %1692 = vmatmul.mubr.bf16.gmra.mrb[0].mxu0 %v1494
    %v1693 = vpop.f32.mrb[0].mxu0
    %v1694 = vadd.f32 %v1421, %v1693
    %v1695 = vpop.f32.mrb[0].mxu0
    %v1696 = vadd.f32 %v1421, %v1695
    %v1697 = vpop.f32.mrb[0].mxu0
    %v1698 = vadd.f32 %v1426, %v1697
    %v1699 = vpop.f32.mrb[0].mxu0
    %v1700 = vadd.f32 %v1426, %v1699
    %1701 = vmatprep.mubr.bf16.mxu0 0
    %1702 = vmatmul.mubr.bf16.gmra.mrb[0].mxu0 %v1495
    %v1703 = vpop.f32.mrb[0].mxu0
    %v1704 = vadd.f32 %v1431, %v1703
    %v1705 = vpop.f32.mrb[0].mxu0
    %v1706 = vadd.f32 %v1431, %v1705
    %v1707 = vpop.f32.mrb[0].mxu0
    %v1708 = vadd.f32 %v1436, %v1707
    %v1709 = vpop.f32.mrb[0].mxu0
    %v1710 = vadd.f32 %v1436, %v1709
    %1711 = vmatprep.mubr.bf16.mxu0 0
    %1712 = vmatmul.mubr.bf16.gmra.mrb[0].mxu0 %v1496
    %v1713 = vpop.f32.mrb[0].mxu0
    %v1714 = vadd.f32 %v1441, %v1713
    %v1715 = vpop.f32.mrb[0].mxu0
    %v1716 = vadd.f32 %v1441, %v1715
    %v1717 = vpop.f32.mrb[0].mxu0
    %v1718 = vadd.f32 %v1446, %v1717
    %v1719 = vpop.f32.mrb[0].mxu0
    %v1720 = vadd.f32 %v1446, %v1719
    %1721 = vmatprep.mubr.bf16.mxu0 0
    %1722 = vmatmul.mubr.bf16.gmra.mrb[0].mxu0 %v1497
    %v1723 = vpop.f32.mrb[0].mxu0
    %v1724 = vadd.f32 %v1451, %v1723
    %v1725 = vpop.f32.mrb[0].mxu0
    %v1726 = vadd.f32 %v1451, %v1725
    %v1727 = vpop.f32.mrb[0].mxu0
    %v1728 = vadd.f32 %v1456, %v1727
    %v1729 = vpop.f32.mrb[0].mxu0
    %v1730 = vadd.f32 %v1456, %v1729
    %1731 = vdwg.mxu0
    %v1732 = vmax.f32 %v1541, 0.0
    %v1733 = vmax.f32 %v1543, 0.0
    %v1734 = vmax.f32 %v1654, 0.0
    %v1735 = vmax.f32 %v1656, 0.0
    %v1736 = vmax.f32 %v1545, 0.0
    %v1737 = vmax.f32 %v1547, 0.0
    %v1738 = vmax.f32 %v1658, 0.0
    %v1739 = vmax.f32 %v1660, 0.0
    %v1740 = vmax.f32 %v1551, 0.0
    %v1741 = vmax.f32 %v1553, 0.0
    %v1742 = vmax.f32 %v1664, 0.0
    %v1743 = vmax.f32 %v1666, 0.0
    %v1744 = vmax.f32 %v1555, 0.0
    %v1745 = vmax.f32 %v1557, 0.0
    %v1746 = vmax.f32 %v1668, 0.0
    %v1747 = vmax.f32 %v1670, 0.0
    %v1748 = vmax.f32 %v1561, 0.0
    %v1749 = vmax.f32 %v1563, 0.0
    %v1750 = vmax.f32 %v1674, 0.0
    %v1751 = vmax.f32 %v1676, 0.0
    %v1752 = vmax.f32 %v1565, 0.0
    %v1753 = vmax.f32 %v1567, 0.0
    %v1754 = vmax.f32 %v1678, 0.0
    %v1755 = vmax.f32 %v1680, 0.0
    %v1756 = vmax.f32 %v1571, 0.0
    %v1757 = vmax.f32 %v1573, 0.0
    %v1758 = vmax.f32 %v1684, 0.0
    %v1759 = vmax.f32 %v1686, 0.0
    %v1760 = vmax.f32 %v1575, 0.0
    %v1761 = vmax.f32 %v1577, 0.0
    %v1762 = vmax.f32 %v1688, 0.0
    %v1763 = vmax.f32 %v1690, 0.0
    %v1764 = vmax.f32 %v1581, 0.0
    %v1765 = vmax.f32 %v1583, 0.0
    %v1766 = vmax.f32 %v1694, 0.0
    %v1767 = vmax.f32 %v1696, 0.0
    %v1768 = vmax.f32 %v1585, 0.0
    %v1769 = vmax.f32 %v1587, 0.0
    %v1770 = vmax.f32 %v1698, 0.0
    %v1771 = vmax.f32 %v1700, 0.0
    %v1772 = vmax.f32 %v1591, 0.0
    %v1773 = vmax.f32 %v1593, 0.0
    %v1774 = vmax.f32 %v1704, 0.0
    %v1775 = vmax.f32 %v1706, 0.0
    %v1776 = vmax.f32 %v1595, 0.0
    %v1777 = vmax.f32 %v1597, 0.0
    %v1778 = vmax.f32 %v1708, 0.0
    %v1779 = vmax.f32 %v1710, 0.0
    %v1780 = vmax.f32 %v1601, 0.0
    %v1781 = vmax.f32 %v1603, 0.0
    %v1782 = vmax.f32 %v1714, 0.0
    %v1783 = vmax.f32 %v1716, 0.0
    %v1784 = vmax.f32 %v1605, 0.0
    %v1785 = vmax.f32 %v1607, 0.0
    %v1786 = vmax.f32 %v1718, 0.0
    %v1787 = vmax.f32 %v1720, 0.0
    %v1788 = vmax.f32 %v1611, 0.0
    %v1789 = vmax.f32 %v1613, 0.0
    %v1790 = vmax.f32 %v1724, 0.0
    %v1791 = vmax.f32 %v1726, 0.0
    %v1792 = vmax.f32 %v1615, 0.0
    %v1793 = vmax.f32 %v1617, 0.0
    %v1794 = vmax.f32 %v1728, 0.0
    %v1795 = vmax.f32 %v1730, 0.0
    %v1796 = vld [vmem:[#allocation15] sm:$0x1]
    %v1797 = vpack.c.bf16 %v1736, %v1732
    %v1798 = vpack.c.bf16 %v1737, %v1733
    %v1799 = vpack.c.bf16 %v1738, %v1734
    %v1800 = vpack.c.bf16 %v1739, %v1735
    %v1801 = vpack.c.bf16 %v1744, %v1740
    %v1802 = vpack.c.bf16 %v1745, %v1741
    %v1803 = vpack.c.bf16 %v1746, %v1742
    %v1804 = vpack.c.bf16 %v1747, %v1743
    %v1805 = vpack.c.bf16 %v1752, %v1748
    %v1806 = vpack.c.bf16 %v1753, %v1749
    %v1807 = vpack.c.bf16 %v1754, %v1750
    %v1808 = vpack.c.bf16 %v1755, %v1751
    %v1809 = vpack.c.bf16 %v1760, %v1756
    %v1810 = vpack.c.bf16 %v1761, %v1757
    %v1811 = vpack.c.bf16 %v1762, %v1758
    %v1812 = vpack.c.bf16 %v1763, %v1759
    %v1813 = vpack.c.bf16 %v1768, %v1764
    %v1814 = vpack.c.bf16 %v1769, %v1765
    %v1815 = vpack.c.bf16 %v1770, %v1766
    %v1816 = vpack.c.bf16 %v1771, %v1767
    %v1817 = vpack.c.bf16 %v1776, %v1772
    %v1818 = vpack.c.bf16 %v1777, %v1773
    %v1819 = vpack.c.bf16 %v1778, %v1774
    %v1820 = vpack.c.bf16 %v1779, %v1775
    %v1821 = vpack.c.bf16 %v1784, %v1780
    %v1822 = vpack.c.bf16 %v1785, %v1781
    %v1823 = vpack.c.bf16 %v1786, %v1782
    %v1824 = vpack.c.bf16 %v1787, %v1783
    %v1825 = vpack.c.bf16 %v1792, %v1788
    %v1826 = vpack.c.bf16 %v1793, %v1789
    %v1827 = vpack.c.bf16 %v1794, %v1790
    %v1828 = vpack.c.bf16 %v1795, %v1791
    %v1829 = vstv %s1105
    %1830 = vmatprep.subr.bf16.mxu0 %v1798
    %1831 = vmatpush1.bf16.msra.mxu0 %v1797
    %1832 = vmatprep.subr.bf16.mxu0 %v1802
    %1833 = vmatpush1.bf16.msra.mxu0 %v1801
    %1834 = vmatprep.subr.bf16.mxu0 %v1806
    %1835 = vmatpush1.bf16.msra.mxu0 %v1805
    %1836 = vmatprep.subr.bf16.mxu0 %v1810
    %1837 = vmatpush1.bf16.msra.mxu0 %v1809
    %1838 = vmatprep.subr.bf16.mxu0 %v1814
    %1839 = vmatpush1.bf16.msra.mxu0 %v1813
    %1840 = vmatprep.subr.bf16.mxu0 %v1818
    %1841 = vmatpush1.bf16.msra.mxu0 %v1817
    %1842 = vmatprep.subr.bf16.mxu0 %v1822
    %1843 = vmatpush1.bf16.msra.mxu0 %v1821
    %1844 = vmatprep.subr.bf16.mxu0 %v1826
    %1845 = vmatpush1.bf16.msra.mxu0 %v1825
    %1846 = vmatprep.subr.bf16.mxu0 0
    %1847 = vmatpush1.bf16.msra.mxu0 0
    %1848 = vmatprep.subr.bf16.mxu0 0
    %1849 = vmatpush1.bf16.msra.mxu0 0
    %1850 = vmatprep.subr.bf16.mxu0 0
    %1851 = vmatpush1.bf16.msra.mxu0 0
    %1852 = vmatprep.subr.bf16.mxu0 0
    %1853 = vmatpush1.bf16.msra.mxu0 0
    %1854 = vmatprep.subr.bf16.mxu0 0
    %1855 = vmatpush1.bf16.msra.mxu0 0
    %1856 = vmatprep.subr.bf16.mxu0 0
    %1857 = vmatpush1.bf16.msra.mxu0 0
    %1858 = vmatprep.subr.bf16.mxu0 0
    %1859 = vmatpush1.bf16.msra.mxu0 0
    %1860 = vmatprep.subr.bf16.mxu0 0
    %1861 = vmatpush1.bf16.msra.mxu0 0
    %1862 = vmatprep.mubr.bf16.mxu0 0
    %1863 = vmatmul.mubr.bf16.gmra.mrb[0].mxu0 %v1796
    %v1864 = vpop.f32.mrb[0].mxu0
    %v1865 = vadd.f32 %v1829, %v1864
    %v1866 = vpop.f32.mrb[0].mxu0
    %v1867 = vadd.f32 %v1829, %v1866
    %v1868 = vpop.f32.mrb[0].mxu0
    %v1869 = vpop.f32.mrb[0].mxu0
    %1870 = vdwg.mxu0
    %1871 = vmatprep.subr.bf16.mxu0 %v1800
    %1872 = vmatpush1.bf16.msra.mxu0 %v1799
    %1873 = vmatprep.subr.bf16.mxu0 %v1804
    %1874 = vmatpush1.bf16.msra.mxu0 %v1803
    %1875 = vmatprep.subr.bf16.mxu0 %v1808
    %1876 = vmatpush1.bf16.msra.mxu0 %v1807
    %1877 = vmatprep.subr.bf16.mxu0 %v1812
    %1878 = vmatpush1.bf16.msra.mxu0 %v1811
    %1879 = vmatprep.subr.bf16.mxu0 %v1816
    %1880 = vmatpush1.bf16.msra.mxu0 %v1815
    %1881 = vmatprep.subr.bf16.mxu0 %v1820
    %1882 = vmatpush1.bf16.msra.mxu0 %v1819
    %1883 = vmatprep.subr.bf16.mxu0 %v1824
    %1884 = vmatpush1.bf16.msra.mxu0 %v1823
    %1885 = vmatprep.subr.bf16.mxu0 %v1828
    %1886 = vmatpush1.bf16.msra.mxu0 %v1827
    %1887 = vmatprep.subr.bf16.mxu0 0
    %1888 = vmatpush1.bf16.msra.mxu0 0
    %1889 = vmatprep.subr.bf16.mxu0 0
    %1890 = vmatpush1.bf16.msra.mxu0 0
    %1891 = vmatprep.subr.bf16.mxu0 0
    %1892 = vmatpush1.bf16.msra.mxu0 0
    %1893 = vmatprep.subr.bf16.mxu0 0
    %1894 = vmatpush1.bf16.msra.mxu0 0
    %1895 = vmatprep.subr.bf16.mxu0 0
    %1896 = vmatpush1.bf16.msra.mxu0 0
    %1897 = vmatprep.subr.bf16.mxu0 0
    %1898 = vmatpush1.bf16.msra.mxu0 0
    %1899 = vmatprep.subr.bf16.mxu0 0
    %1900 = vmatpush1.bf16.msra.mxu0 0
    %1901 = vmatprep.subr.bf16.mxu0 0
    %1902 = vmatpush1.bf16.msra.mxu0 0
    %1903 = vmatprep.mubr.bf16.mxu0 0
    %1904 = vmatmul.mubr.bf16.gmra.mrb[0].mxu0 %v1796
    %v1905 = vpop.f32.mrb[0].mxu0
    %v1906 = vadd.f32 %v1829, %v1905
    %v1907 = vpop.f32.mrb[0].mxu0
    %v1908 = vadd.f32 %v1829, %v1907
    %v1909 = vpop.f32.mrb[0].mxu0
    %v1910 = vpop.f32.mrb[0].mxu0
    %1911 = vdwg.mxu0
    %v1912 = vsub.f32 0.0, %v1865
    %v1913 = vsub.f32 0.0, %v1867
    %v1914 = vsub.f32 0.0, %v1906
    %v1915 = vsub.f32 0.0, %v1908
    %v1916 = vmul.f32 %v1912, 1.442695
    %v1917 = vpow.pop %v1916
    %v1918 = vmul.f32 %v1913, 1.442695
    %v1919 = vpow.pop %v1918
    %v1920 = vmul.f32 %v1914, 1.442695
    %v1921 = vpow.pop %v1920
    %v1922 = vmul.f32 %v1915, 1.442695
    %v1923 = vpow.pop %v1922
    %v1924 = vadd.f32 %v1917, 1.0
    %v1925 = vadd.f32 %v1919, 1.0
    %v1926 = vadd.f32 %v1921, 1.0
    %v1927 = vadd.f32 %v1923, 1.0
    %v1928 = vrcp.pop %v1924
    %v1929 = vmul.f32 1.0, %v1928
    %v1930 = vrcp.pop %v1925
    %v1931 = vmul.f32 1.0, %v1930
    %v1932 = vrcp.pop %v1926
    %v1933 = vmul.f32 1.0, %v1932
    %v1934 = vrcp.pop %v1927
    %v1935 = vmul.f32 1.0, %v1934
    %v1940 = vcombine.low %v1929, %v1931
    %v1941 = vcombine.low %v1933, %v1935
    %v1943 = vunpack.c.l.s4 1966171168
    %v1944 = vunpack.c.0.s8 %v1943
    %v1945 = vlaneseq
    %v1946 = vshrl.u32 %v1945, 7
    %v1947 = vsub.s32 %v1944, %v1946
    %v1948 = vrot.slane %v1940, %v1947
    %v1950 = vunpack.c.l.s4 1966171168
    %v1951 = vunpack.c.0.s8 %v1950
    %v1952 = vlaneseq
    %v1953 = vshrl.u32 %v1952, 7
    %v1954 = vsub.s32 %v1951, %v1953
    %v1955 = vrot.slane %v1941, %v1954
    %v1956 = vcombine.low %v1948, %v1955
    %v1958 = vunpack.c.l.s4 1966171168
    %v1959 = vunpack.c.0.s8 %v1958
    %v1960 = vlaneseq
    %v1961 = vshrl.u32 %v1960, 7
    %v1962 = vsub.s32 %v1959, %v1961
    %v1963 = vrot.slane %v1956, %v1962
    %v1965 = vlaneseq
    %vm1966 = vcmp.ge.s32.totalorder %v1965, 0
    %vm1967 = vcmp.lt.s32.totalorder %v1965, 512
    %vm1968 = vmand %vm1966, %vm1967
    %1969 = vst.msk [vmem:[#allocation17] sm:$0xf] %vm1968, %v1963
    // Predicated region
    $region70: #{tpu_custom_call.1} parent=1 // pred_check
      _
    $region71: #{tpu_custom_call.1} parent=1 // pred_check_branch
      %1971 = sbr.rel (0) target = $region73
    $region72: #{tpu_custom_call.1} parent=1 // pred_region
      %s1973 = ssub.s32 64, 64
      %1974 = vsyncadd [#allocation5], %s1973
      %s1976 = sshll.u32 [#allocation17], 4
      %s1977 = int_to_ptr.vmem [resolvable:$true] %s1976
      %1979 = dma.vmem_to_hbm [thread:$0]  %s1977, 64, %s9, [#allocation5]
    $region73: #{tpu_custom_call.1} parent=1 // pred_fallthru
      _
    // Predicated region
    $region74: #{tpu_custom_call.1} parent=1 // pred_check
      _
    $region75: #{tpu_custom_call.1} parent=1 // pred_check_branch
      %1981 = sbr.rel (0) target = $region77
    $region76: #{tpu_custom_call.1} parent=1 // pred_region
      %1982 = dma.done [#allocation5], 64
    $region77: #{tpu_custom_call.1} parent=1 // pred_fallthru
      _
    %1983 = vsyncpa [#allocation4], 1
    %1984 = vsyncpa [#allocation7], 1
    %1985 = vsyncpa [#allocation10], 1
    %1986 = vsyncpa [#allocation13], 1
    %1987 = vsyncpa [#allocation16], 1
    %1988 = vsyncpa [#allocation5], 1

</llo_original>
